<compile_context>
chip_gen: v5e
topology: v5e:2x2
jax: 0.10.0
libtpu: 0.0.40
codegen_flags: <defaults>
</compile_context>

<pallas_src>
import functools

import numpy as np

import jax
import jax.numpy as jnp
from jax.experimental import pallas as pl
from jax.experimental.pallas import tpu as pltpu


def _make_tap_masks(H, W):
    """(9, H*W) f32 masks: 1 where the (dy, dx)-shifted neighbor is in-bounds."""
    HW = H * W
    q = np.arange(HW)
    y, x = q // W, q % W
    masks = np.zeros((9, HW), np.float32)
    for k in range(9):
        dy, dx = k // 3 - 1, k % 3 - 1
        valid = (y + dy >= 0) & (y + dy < H) & (x + dx >= 0) & (x + dx < W)
        masks[k] = valid.astype(np.float32)
    return masks


def _pick_batch_tile(B, cap=4):
    """Largest Bt <= cap dividing B while keeping >= 2 grid steps.

    >= 2 steps keeps both v7x TensorCores busy; the cap bounds the live
    (C, Bt*HW) f32 slabs (x / h1 / residual) against the 64-vreg file.
    """
    for bt in range(min(cap, B), 0, -1):
        if B % bt == 0 and (B // bt >= 2 or B == 1):
            return bt
    return 1


def rcab_kernel(x_ref, masks_ref, w1_ref, b1_ref, w2_ref, b2_ref,
                w3_ref, b3_ref, w4_ref, b4_ref,
                out_ref, patches_ref, *, W, HW, Bt):
    """Fused RCAB for Bt images in channel-major (C, Bt*HW) layout.

    x_ref      : (1, C, N)   N = Bt*HW merged batch/spatial lanes (f32)
    masks_ref  : (9, N)      per-tap zero-padding border masks (tiled per image)
    w1_ref     : (C, 9C)     conv1 weights, bf16, column index = tap*C + cin
    b1_ref     : (C, 1)      f32
    w2_ref     : (C, 9C)     conv2 weights, bf16
    b2_ref     : (C, 1)
    w3_ref     : (Cr, C)     squeeze 1x1 conv (f32, tiny)
    b3_ref     : (Cr, 1)
    w4_ref     : (C, Cr)     excite 1x1 conv
    b4_ref     : (C, 1)
    out_ref    : (1, C, N)
    patches_ref: (9C, N)     bf16 im2col scratch, reused by both convs
    """
    C = x_ref.shape[1]
    N = x_ref.shape[2]          # Bt * HW

    def build_patches(src):
        # im2col over the merged Bt*HW lane axis.  Shifts are XLU lane rolls;
        # any roll that crosses an image (or global) boundary lands only on
        # lanes whose 3x3 tap is out of the padded window, which the
        # precomputed masks zero.  Stored bf16 (MXU operand dtype) -> half the
        # vst/vld traffic and half the VMEM of the f32 slab.
        for k in range(9):
            dy, dx = k // 3 - 1, k % 3 - 1
            off = dy * W + dx
            rows = slice(k * C, (k + 1) * C)
            if off == 0:
                patches_ref[rows, :] = src.astype(patches_ref.dtype)
            else:
                shifted = pltpu.roll(src, shift=(-off) % N, axis=1)
                patches_ref[rows, :] = (
                    shifted * masks_ref[k:k + 1, :]).astype(patches_ref.dtype)

    # ---- conv1 (3x3, pad=1) + ReLU: one bf16 K=9C matmul, f32 accumulate ---
    build_patches(x_ref[0])
    h1 = jnp.maximum(
        jnp.dot(w1_ref[...], patches_ref[...],
                preferred_element_type=jnp.float32) + b1_ref[...], 0.0)

    # ---- conv2 (3x3, pad=1) -> residual -------------------------------------
    build_patches(h1)
    residual = (jnp.dot(w2_ref[...], patches_ref[...],
                        preferred_element_type=jnp.float32) + b2_ref[...])

    # ---- channel attention: per-image GAP -> 1x1 -> ReLU -> 1x1 -> sigmoid --
    # Per-image pooling uses static lane-aligned slices (HW = multiple of 128);
    # the two 1x1 convs then run batched over all Bt images in one dot each.
    pooled = jnp.concatenate(
        [jnp.sum(residual[:, b * HW:(b + 1) * HW], axis=1, keepdims=True)
         for b in range(Bt)], axis=1) * (1.0 / HW)                   # (C, Bt)
    hidden = jnp.maximum(
        jnp.dot(w3_ref[...], pooled, preferred_element_type=jnp.float32)
        + b3_ref[...], 0.0)                                          # (Cr, Bt)
    logits = (jnp.dot(w4_ref[...], hidden, preferred_element_type=jnp.float32)
              + b4_ref[...])                                         # (C, Bt)
    # Exact sigmoid: the approx reciprocal's error multiplied into every pixel
    # and failed the parity check; only C*Bt values, so exact is free.
    attn = 1.0 / (1.0 + jnp.exp(-logits))                            # (C, Bt)

    # ---- residual add with per-(image, channel) scaling (lane-dense store) --
    x = x_ref[0]
    for b in range(Bt):
        s = slice(b * HW, (b + 1) * HW)
        out_ref[0, :, s] = (
            x[:, s] + residual[:, s] * attn[:, b:b + 1]).astype(out_ref.dtype)


@jax.jit
def rcab_forward(x_nchw, w1, b1, w2, b2, w3, b3, w4, b4):
    """x_nchw: (B, C, H, W) float32. 3x3 conv weights HWIO, 1x1 convs as (in, out)."""
    B, C, H, W = x_nchw.shape
    HW = H * W
    Cr = w3.shape[1]

    Bt = _pick_batch_tile(B)
    nsteps = B // Bt
    N = Bt * HW

    # Channel-major with Bt images merged into the lane axis:
    # (B, C, H, W) -> (nsteps, C, Bt*HW).  Layout plumbing stays in XLA.
    x_steps = (x_nchw.reshape(nsteps, Bt, C, HW)
               .transpose(0, 2, 1, 3)
               .reshape(nsteps, C, N))

    # Border masks, tiled once per image along the merged lane axis.
    masks = jnp.asarray(np.tile(_make_tap_masks(H, W), (1, Bt)))     # (9, N)

    # 3x3 conv weights HWIO (3,3,C,C) -> (C, 9C), bf16 for the MXU fast path
    # (accumulation stays f32 via preferred_element_type).
    w1t = jnp.transpose(w1.reshape(9 * C, C)).astype(jnp.bfloat16)
    w2t = jnp.transpose(w2.reshape(9 * C, C)).astype(jnp.bfloat16)
    b1c = b1.reshape(C, 1)
    b2c = b2.reshape(C, 1)
    w3t = jnp.transpose(w3)                      # (Cr, C) f32 (tiny)
    b3c = b3.reshape(Cr, 1)
    w4t = jnp.transpose(w4)                      # (C, Cr)
    b4c = b4.reshape(C, 1)

    kernel = functools.partial(rcab_kernel, W=W, HW=HW, Bt=Bt)

    # Constant-index blocks (weights/masks/biases): Pallas does not re-issue
    # the DMA when the block index is unchanged between consecutive steps.
    def const(s):
        return (0, 0)

    out = pl.pallas_call(
        kernel,
        out_shape=jax.ShapeDtypeStruct((nsteps, C, N), x_nchw.dtype),
        grid_spec=pltpu.PrefetchScalarGridSpec(
            num_scalar_prefetch=0,
            grid=(nsteps,),
            in_specs=[
                pl.BlockSpec((1, C, N), lambda s: (s, 0, 0)),
                pl.BlockSpec((9, N), const),
                pl.BlockSpec((C, 9 * C), const),
                pl.BlockSpec((C, 1), const),
                pl.BlockSpec((C, 9 * C), const),
                pl.BlockSpec((C, 1), const),
                pl.BlockSpec((Cr, C), const),
                pl.BlockSpec((Cr, 1), const),
                pl.BlockSpec((C, Cr), const),
                pl.BlockSpec((C, 1), const),
            ],
            out_specs=pl.BlockSpec((1, C, N), lambda s: (s, 0, 0)),
            # bf16 im2col scratch shared by both convs.
            # TODO(synk): at production H*W, switch to row-block tiles with a
            # 1-row halo + dy-grouped K=3C dots to bound this slab on v7x.
            scratch_shapes=[pltpu.VMEM((9 * C, N), jnp.bfloat16)],
        ),
        compiler_params=pltpu.CompilerParams(
            dimension_semantics=("parallel",),   # >=2 steps: v7x TCs split batch
            vmem_limit_bytes=64 * 1024 * 1024),  # raise toward 128 MiB on v5e/v6e
    )(x_steps, masks, w1t, b1c, w2t, b2c, w3t, b3c, w4t, b4c)

    return (out.reshape(nsteps, C, Bt, HW)
            .transpose(0, 2, 1, 3)
            .reshape(B, C, H, W))


def rcab_reference(x_nchw, w1, b1, w2, b2, w3, b3, w4, b4):
    """Pure-JAX f32 reference mirroring the PyTorch forward (NCHW)."""
    def conv3x3(x, w, b):
        y = jax.lax.conv_general_dilated(
            x, w, window_strides=(1, 1), padding="SAME",
            dimension_numbers=("NCHW", "HWIO", "NCHW"))
        return y + b.reshape(1, -1, 1, 1)

    residual = conv3x3(jnp.maximum(conv3x3(x_nchw, w1, b1), 0.0), w2, b2)
    pooled = jnp.mean(residual, axis=(2, 3))                       # (B, C)
    hidden = jnp.maximum(pooled @ w3 + b3, 0.0)                    # (B, Cr)
    attn = jax.nn.sigmoid(hidden @ w4 + b4)                        # (B, C)
    return x_nchw + residual * attn[:, :, None, None]


if __name__ == "__main__":
    B, C, H, W = 2, 32, 16, 16
    reduction = 16
    Cr = C // reduction

    key = jax.random.PRNGKey(0)
    kx, k1, k2, k3, k4, k5, k6, k7, k8 = jax.random.split(key, 9)

    x = jax.random.normal(kx, (B, C, H, W), jnp.float32)

    # Deterministic parameter init (HWIO for 3x3 convs, (in, out) for 1x1 convs).
    w1 = jax.random.normal(k1, (3, 3, C, C), jnp.float32) * 0.05
    b1 = jax.random.normal(k2, (C,), jnp.float32) * 0.05
    w2 = jax.random.normal(k3, (3, 3, C, C), jnp.float32) * 0.05
    b2 = jax.random.normal(k4, (C,), jnp.float32) * 0.05
    w3 = jax.random.normal(k5, (C, Cr), jnp.float32) * 0.05
    b3 = jax.random.normal(k6, (Cr,), jnp.float32) * 0.05
    w4 = jax.random.normal(k7, (Cr, C), jnp.float32) * 0.05
    b4 = jax.random.normal(k8, (C,), jnp.float32) * 0.05

    out = rcab_forward(x, w1, b1, w2, b2, w3, b3, w4, b4)
    out = jax.block_until_ready(out)

    ref = rcab_reference(x, w1, b1, w2, b2, w3, b3, w4, b4)
    assert out.shape == (B, C, H, W)
    # Tolerance accounts for bf16 MXU operands (f32 accumulation) vs the pure
    # f32 reference; structural bugs would show up as O(0.1 - 1) errors.
    max_err = float(jnp.max(jnp.abs(out - ref)))
    assert jnp.allclose(out, ref, rtol=2e-2, atol=2e-2), max_err

    print("KERNEL_OK")
</pallas_src>

<mosaic_0001>
module attributes {stable_mosaic.version = 11 : i64} {
  func.func @rcab_kernel(%arg0: i32, %arg1: memref<1x32x256xf32, #tpu.memory_space<vmem>>, %arg2: memref<9x256xf32, #tpu.memory_space<vmem>>, %arg3: memref<32x288xbf16, #tpu.memory_space<vmem>>, %arg4: memref<32x1xf32, #tpu.memory_space<vmem>>, %arg5: memref<32x288xbf16, #tpu.memory_space<vmem>>, %arg6: memref<32x1xf32, #tpu.memory_space<vmem>>, %arg7: memref<2x32xf32, #tpu.memory_space<vmem>>, %arg8: memref<2x1xf32, #tpu.memory_space<vmem>>, %arg9: memref<32x2xf32, #tpu.memory_space<vmem>>, %arg10: memref<32x1xf32, #tpu.memory_space<vmem>>, %arg11: memref<1x32x256xf32, #tpu.memory_space<vmem>>, %arg12: memref<288x256xbf16, #tpu.memory_space<vmem>>) attributes {dimension_semantics = [#tpu.dimension_semantics<parallel>], iteration_bounds = array<i64: 2>, scalar_prefetch = 0 : i64, scratch_operands = 1 : i64, tpu.core_type = #tpu.core_type<tc>, window_params = [{transform_indices = @transform_0, window_bounds = array<i64: 1, 32, 256>}, {pipeline_mode = #tpu.pipeline_mode<synchronous>, transform_indices = @transform_1, window_bounds = array<i64: 9, 256>}, {pipeline_mode = #tpu.pipeline_mode<synchronous>, transform_indices = @transform_2, window_bounds = array<i64: 32, 288>}, {pipeline_mode = #tpu.pipeline_mode<synchronous>, transform_indices = @transform_3, window_bounds = array<i64: 32, 1>}, {pipeline_mode = #tpu.pipeline_mode<synchronous>, transform_indices = @transform_4, window_bounds = array<i64: 32, 288>}, {pipeline_mode = #tpu.pipeline_mode<synchronous>, transform_indices = @transform_5, window_bounds = array<i64: 32, 1>}, {pipeline_mode = #tpu.pipeline_mode<synchronous>, transform_indices = @transform_6, window_bounds = array<i64: 2, 32>}, {pipeline_mode = #tpu.pipeline_mode<synchronous>, transform_indices = @transform_7, window_bounds = array<i64: 2, 1>}, {pipeline_mode = #tpu.pipeline_mode<synchronous>, transform_indices = @transform_8, window_bounds = array<i64: 32, 2>}, {pipeline_mode = #tpu.pipeline_mode<synchronous>, transform_indices = @transform_9, window_bounds = array<i64: 32, 1>}, {transform_indices = @transform_10, window_bounds = array<i64: 1, 32, 256>}]} {
    %c0 = arith.constant 0 : index
    %c0_0 = arith.constant 0 : index
    %c0_1 = arith.constant 0 : index
    %0 = vector.load %arg1[%c0, %c0_0, %c0_1] : memref<1x32x256xf32, #tpu.memory_space<vmem>>, vector<1x32x256xf32>
    %1 = vector.shape_cast %0 : vector<1x32x256xf32> to vector<32x256xf32>
    %c17_i32 = arith.constant 17 : i32
    %2 = tpu.dynamic_rotate %1 by %c17_i32 dim 1 : vector<32x256xf32>, i32 -> vector<32x256xf32>
    %c0_2 = arith.constant 0 : index
    %c0_3 = arith.constant 0 : index
    %3 = vector.load %arg2[%c0_2, %c0_3] : memref<9x256xf32, #tpu.memory_space<vmem>>, vector<1x256xf32>
    %4 = vector.broadcast %3 : vector<1x256xf32> to vector<32x256xf32>
    %5 = arith.mulf %2, %4 : vector<32x256xf32>
    %6 = arith.truncf %5 : vector<32x256xf32> to vector<32x256xbf16>
    %c0_4 = arith.constant 0 : index
    %c0_5 = arith.constant 0 : index
    %7 = vector.load %arg12[%c0_4, %c0_5] : memref<288x256xbf16, #tpu.memory_space<vmem>>, vector<32x256xbf16>
    tpu.vector_store %arg12[%c0_4, %c0_5], %6 {strides = array<i32>} : memref<288x256xbf16, #tpu.memory_space<vmem>>, vector<32x256xbf16>,
    %c16_i32 = arith.constant 16 : i32
    %8 = tpu.dynamic_rotate %1 by %c16_i32 dim 1 : vector<32x256xf32>, i32 -> vector<32x256xf32>
    %c1 = arith.constant 1 : index
    %c0_6 = arith.constant 0 : index
    %9 = vector.load %arg2[%c1, %c0_6] : memref<9x256xf32, #tpu.memory_space<vmem>>, vector<1x256xf32>
    %10 = vector.broadcast %9 : vector<1x256xf32> to vector<32x256xf32>
    %11 = arith.mulf %8, %10 : vector<32x256xf32>
    %12 = arith.truncf %11 : vector<32x256xf32> to vector<32x256xbf16>
    %c32 = arith.constant 32 : index
    %c0_7 = arith.constant 0 : index
    %13 = vector.load %arg12[%c32, %c0_7] : memref<288x256xbf16, #tpu.memory_space<vmem>>, vector<32x256xbf16>
    tpu.vector_store %arg12[%c32, %c0_7], %12 {strides = array<i32>} : memref<288x256xbf16, #tpu.memory_space<vmem>>, vector<32x256xbf16>,
    %c15_i32 = arith.constant 15 : i32
    %14 = tpu.dynamic_rotate %1 by %c15_i32 dim 1 : vector<32x256xf32>, i32 -> vector<32x256xf32>
    %c2 = arith.constant 2 : index
    %c0_8 = arith.constant 0 : index
    %15 = vector.load %arg2[%c2, %c0_8] : memref<9x256xf32, #tpu.memory_space<vmem>>, vector<1x256xf32>
    %16 = vector.broadcast %15 : vector<1x256xf32> to vector<32x256xf32>
    %17 = arith.mulf %14, %16 : vector<32x256xf32>
    %18 = arith.truncf %17 : vector<32x256xf32> to vector<32x256xbf16>
    %c64 = arith.constant 64 : index
    %c0_9 = arith.constant 0 : index
    %19 = vector.load %arg12[%c64, %c0_9] : memref<288x256xbf16, #tpu.memory_space<vmem>>, vector<32x256xbf16>
    tpu.vector_store %arg12[%c64, %c0_9], %18 {strides = array<i32>} : memref<288x256xbf16, #tpu.memory_space<vmem>>, vector<32x256xbf16>,
    %c1_i32 = arith.constant 1 : i32
    %20 = tpu.dynamic_rotate %1 by %c1_i32 dim 1 : vector<32x256xf32>, i32 -> vector<32x256xf32>
    %c3 = arith.constant 3 : index
    %c0_10 = arith.constant 0 : index
    %21 = vector.load %arg2[%c3, %c0_10] : memref<9x256xf32, #tpu.memory_space<vmem>>, vector<1x256xf32>
    %22 = vector.broadcast %21 : vector<1x256xf32> to vector<32x256xf32>
    %23 = arith.mulf %20, %22 : vector<32x256xf32>
    %24 = arith.truncf %23 : vector<32x256xf32> to vector<32x256xbf16>
    %c96 = arith.constant 96 : index
    %c0_11 = arith.constant 0 : index
    %25 = vector.load %arg12[%c96, %c0_11] : memref<288x256xbf16, #tpu.memory_space<vmem>>, vector<32x256xbf16>
    tpu.vector_store %arg12[%c96, %c0_11], %24 {strides = array<i32>} : memref<288x256xbf16, #tpu.memory_space<vmem>>, vector<32x256xbf16>,
    %26 = arith.truncf %1 : vector<32x256xf32> to vector<32x256xbf16>
    %c128 = arith.constant 128 : index
    %c0_12 = arith.constant 0 : index
    %27 = vector.load %arg12[%c128, %c0_12] : memref<288x256xbf16, #tpu.memory_space<vmem>>, vector<32x256xbf16>
    tpu.vector_store %arg12[%c128, %c0_12], %26 {strides = array<i32>} : memref<288x256xbf16, #tpu.memory_space<vmem>>, vector<32x256xbf16>,
    %c255_i32 = arith.constant 255 : i32
    %28 = tpu.dynamic_rotate %1 by %c255_i32 dim 1 : vector<32x256xf32>, i32 -> vector<32x256xf32>
    %c5 = arith.constant 5 : index
    %c0_13 = arith.constant 0 : index
    %29 = vector.load %arg2[%c5, %c0_13] : memref<9x256xf32, #tpu.memory_space<vmem>>, vector<1x256xf32>
    %30 = vector.broadcast %29 : vector<1x256xf32> to vector<32x256xf32>
    %31 = arith.mulf %28, %30 : vector<32x256xf32>
    %32 = arith.truncf %31 : vector<32x256xf32> to vector<32x256xbf16>
    %c160 = arith.constant 160 : index
    %c0_14 = arith.constant 0 : index
    %33 = vector.load %arg12[%c160, %c0_14] : memref<288x256xbf16, #tpu.memory_space<vmem>>, vector<32x256xbf16>
    tpu.vector_store %arg12[%c160, %c0_14], %32 {strides = array<i32>} : memref<288x256xbf16, #tpu.memory_space<vmem>>, vector<32x256xbf16>,
    %c241_i32 = arith.constant 241 : i32
    %34 = tpu.dynamic_rotate %1 by %c241_i32 dim 1 : vector<32x256xf32>, i32 -> vector<32x256xf32>
    %c6 = arith.constant 6 : index
    %c0_15 = arith.constant 0 : index
    %35 = vector.load %arg2[%c6, %c0_15] : memref<9x256xf32, #tpu.memory_space<vmem>>, vector<1x256xf32>
    %36 = vector.broadcast %35 : vector<1x256xf32> to vector<32x256xf32>
    %37 = arith.mulf %34, %36 : vector<32x256xf32>
    %38 = arith.truncf %37 : vector<32x256xf32> to vector<32x256xbf16>
    %c192 = arith.constant 192 : index
    %c0_16 = arith.constant 0 : index
    %39 = vector.load %arg12[%c192, %c0_16] : memref<288x256xbf16, #tpu.memory_space<vmem>>, vector<32x256xbf16>
    tpu.vector_store %arg12[%c192, %c0_16], %38 {strides = array<i32>} : memref<288x256xbf16, #tpu.memory_space<vmem>>, vector<32x256xbf16>,
    %c240_i32 = arith.constant 240 : i32
    %40 = tpu.dynamic_rotate %1 by %c240_i32 dim 1 : vector<32x256xf32>, i32 -> vector<32x256xf32>
    %c7 = arith.constant 7 : index
    %c0_17 = arith.constant 0 : index
    %41 = vector.load %arg2[%c7, %c0_17] : memref<9x256xf32, #tpu.memory_space<vmem>>, vector<1x256xf32>
    %42 = vector.broadcast %41 : vector<1x256xf32> to vector<32x256xf32>
    %43 = arith.mulf %40, %42 : vector<32x256xf32>
    %44 = arith.truncf %43 : vector<32x256xf32> to vector<32x256xbf16>
    %c224 = arith.constant 224 : index
    %c0_18 = arith.constant 0 : index
    %45 = vector.load %arg12[%c224, %c0_18] : memref<288x256xbf16, #tpu.memory_space<vmem>>, vector<32x256xbf16>
    tpu.vector_store %arg12[%c224, %c0_18], %44 {strides = array<i32>} : memref<288x256xbf16, #tpu.memory_space<vmem>>, vector<32x256xbf16>,
    %c239_i32 = arith.constant 239 : i32
    %46 = tpu.dynamic_rotate %1 by %c239_i32 dim 1 : vector<32x256xf32>, i32 -> vector<32x256xf32>
    %c8 = arith.constant 8 : index
    %c0_19 = arith.constant 0 : index
    %47 = vector.load %arg2[%c8, %c0_19] : memref<9x256xf32, #tpu.memory_space<vmem>>, vector<1x256xf32>
    %48 = vector.broadcast %47 : vector<1x256xf32> to vector<32x256xf32>
    %49 = arith.mulf %46, %48 : vector<32x256xf32>
    %50 = arith.truncf %49 : vector<32x256xf32> to vector<32x256xbf16>
    %c256 = arith.constant 256 : index
    %c0_20 = arith.constant 0 : index
    %51 = vector.load %arg12[%c256, %c0_20] : memref<288x256xbf16, #tpu.memory_space<vmem>>, vector<32x256xbf16>
    tpu.vector_store %arg12[%c256, %c0_20], %50 {strides = array<i32>} : memref<288x256xbf16, #tpu.memory_space<vmem>>, vector<32x256xbf16>,
    %c0_21 = arith.constant 0 : index
    %c0_22 = arith.constant 0 : index
    %52 = vector.load %arg3[%c0_21, %c0_22] : memref<32x288xbf16, #tpu.memory_space<vmem>>, vector<32x288xbf16>
    %c0_23 = arith.constant 0 : index
    %c0_24 = arith.constant 0 : index
    %53 = vector.load %arg12[%c0_23, %c0_24] : memref<288x256xbf16, #tpu.memory_space<vmem>>, vector<288x256xbf16>
    %cst = arith.constant dense<0.000000e+00> : vector<32x256xf32>
    %54 = tpu.matmul %52, %53, %cst {dimension_numbers = #tpu.dot_dimension_numbers<[1], [0], [0], [1], [0, 0, 1, 1], [], []>} : vector<32x288xbf16>, vector<288x256xbf16>, vector<32x256xf32> -> vector<32x256xf32>
    %c0_25 = arith.constant 0 : index
    %c0_26 = arith.constant 0 : index
    %55 = vector.load %arg4[%c0_25, %c0_26] : memref<32x1xf32, #tpu.memory_space<vmem>>, vector<32x1xf32>
    %56 = vector.broadcast %55 : vector<32x1xf32> to vector<32x256xf32>
    %57 = arith.addf %54, %56 : vector<32x256xf32>
    %cst_27 = arith.constant 0.000000e+00 : f32
    %58 = vector.broadcast %cst_27 : f32 to vector<32x256xf32>
    %59 = arith.maximumf %57, %58 : vector<32x256xf32>
    %c17_i32_28 = arith.constant 17 : i32
    %60 = tpu.dynamic_rotate %59 by %c17_i32_28 dim 1 : vector<32x256xf32>, i32 -> vector<32x256xf32>
    %c0_29 = arith.constant 0 : index
    %c0_30 = arith.constant 0 : index
    %61 = vector.load %arg2[%c0_29, %c0_30] : memref<9x256xf32, #tpu.memory_space<vmem>>, vector<1x256xf32>
    %62 = vector.broadcast %61 : vector<1x256xf32> to vector<32x256xf32>
    %63 = arith.mulf %60, %62 : vector<32x256xf32>
    %64 = arith.truncf %63 : vector<32x256xf32> to vector<32x256xbf16>
    %c0_31 = arith.constant 0 : index
    %c0_32 = arith.constant 0 : index
    %65 = vector.load %arg12[%c0_31, %c0_32] : memref<288x256xbf16, #tpu.memory_space<vmem>>, vector<32x256xbf16>
    tpu.vector_store %arg12[%c0_31, %c0_32], %64 {strides = array<i32>} : memref<288x256xbf16, #tpu.memory_space<vmem>>, vector<32x256xbf16>,
    %c16_i32_33 = arith.constant 16 : i32
    %66 = tpu.dynamic_rotate %59 by %c16_i32_33 dim 1 : vector<32x256xf32>, i32 -> vector<32x256xf32>
    %c1_34 = arith.constant 1 : index
    %c0_35 = arith.constant 0 : index
    %67 = vector.load %arg2[%c1_34, %c0_35] : memref<9x256xf32, #tpu.memory_space<vmem>>, vector<1x256xf32>
    %68 = vector.broadcast %67 : vector<1x256xf32> to vector<32x256xf32>
    %69 = arith.mulf %66, %68 : vector<32x256xf32>
    %70 = arith.truncf %69 : vector<32x256xf32> to vector<32x256xbf16>
    %c32_36 = arith.constant 32 : index
    %c0_37 = arith.constant 0 : index
    %71 = vector.load %arg12[%c32_36, %c0_37] : memref<288x256xbf16, #tpu.memory_space<vmem>>, vector<32x256xbf16>
    tpu.vector_store %arg12[%c32_36, %c0_37], %70 {strides = array<i32>} : memref<288x256xbf16, #tpu.memory_space<vmem>>, vector<32x256xbf16>,
    %c15_i32_38 = arith.constant 15 : i32
    %72 = tpu.dynamic_rotate %59 by %c15_i32_38 dim 1 : vector<32x256xf32>, i32 -> vector<32x256xf32>
    %c2_39 = arith.constant 2 : index
    %c0_40 = arith.constant 0 : index
    %73 = vector.load %arg2[%c2_39, %c0_40] : memref<9x256xf32, #tpu.memory_space<vmem>>, vector<1x256xf32>
    %74 = vector.broadcast %73 : vector<1x256xf32> to vector<32x256xf32>
    %75 = arith.mulf %72, %74 : vector<32x256xf32>
    %76 = arith.truncf %75 : vector<32x256xf32> to vector<32x256xbf16>
    %c64_41 = arith.constant 64 : index
    %c0_42 = arith.constant 0 : index
    %77 = vector.load %arg12[%c64_41, %c0_42] : memref<288x256xbf16, #tpu.memory_space<vmem>>, vector<32x256xbf16>
    tpu.vector_store %arg12[%c64_41, %c0_42], %76 {strides = array<i32>} : memref<288x256xbf16, #tpu.memory_space<vmem>>, vector<32x256xbf16>,
    %c1_i32_43 = arith.constant 1 : i32
    %78 = tpu.dynamic_rotate %59 by %c1_i32_43 dim 1 : vector<32x256xf32>, i32 -> vector<32x256xf32>
    %c3_44 = arith.constant 3 : index
    %c0_45 = arith.constant 0 : index
    %79 = vector.load %arg2[%c3_44, %c0_45] : memref<9x256xf32, #tpu.memory_space<vmem>>, vector<1x256xf32>
    %80 = vector.broadcast %79 : vector<1x256xf32> to vector<32x256xf32>
    %81 = arith.mulf %78, %80 : vector<32x256xf32>
    %82 = arith.truncf %81 : vector<32x256xf32> to vector<32x256xbf16>
    %c96_46 = arith.constant 96 : index
    %c0_47 = arith.constant 0 : index
    %83 = vector.load %arg12[%c96_46, %c0_47] : memref<288x256xbf16, #tpu.memory_space<vmem>>, vector<32x256xbf16>
    tpu.vector_store %arg12[%c96_46, %c0_47], %82 {strides = array<i32>} : memref<288x256xbf16, #tpu.memory_space<vmem>>, vector<32x256xbf16>,
    %84 = arith.truncf %59 : vector<32x256xf32> to vector<32x256xbf16>
    %c128_48 = arith.constant 128 : index
    %c0_49 = arith.constant 0 : index
    %85 = vector.load %arg12[%c128_48, %c0_49] : memref<288x256xbf16, #tpu.memory_space<vmem>>, vector<32x256xbf16>
    tpu.vector_store %arg12[%c128_48, %c0_49], %84 {strides = array<i32>} : memref<288x256xbf16, #tpu.memory_space<vmem>>, vector<32x256xbf16>,
    %c255_i32_50 = arith.constant 255 : i32
    %86 = tpu.dynamic_rotate %59 by %c255_i32_50 dim 1 : vector<32x256xf32>, i32 -> vector<32x256xf32>
    %c5_51 = arith.constant 5 : index
    %c0_52 = arith.constant 0 : index
    %87 = vector.load %arg2[%c5_51, %c0_52] : memref<9x256xf32, #tpu.memory_space<vmem>>, vector<1x256xf32>
    %88 = vector.broadcast %87 : vector<1x256xf32> to vector<32x256xf32>
    %89 = arith.mulf %86, %88 : vector<32x256xf32>
    %90 = arith.truncf %89 : vector<32x256xf32> to vector<32x256xbf16>
    %c160_53 = arith.constant 160 : index
    %c0_54 = arith.constant 0 : index
    %91 = vector.load %arg12[%c160_53, %c0_54] : memref<288x256xbf16, #tpu.memory_space<vmem>>, vector<32x256xbf16>
    tpu.vector_store %arg12[%c160_53, %c0_54], %90 {strides = array<i32>} : memref<288x256xbf16, #tpu.memory_space<vmem>>, vector<32x256xbf16>,
    %c241_i32_55 = arith.constant 241 : i32
    %92 = tpu.dynamic_rotate %59 by %c241_i32_55 dim 1 : vector<32x256xf32>, i32 -> vector<32x256xf32>
    %c6_56 = arith.constant 6 : index
    %c0_57 = arith.constant 0 : index
    %93 = vector.load %arg2[%c6_56, %c0_57] : memref<9x256xf32, #tpu.memory_space<vmem>>, vector<1x256xf32>
    %94 = vector.broadcast %93 : vector<1x256xf32> to vector<32x256xf32>
    %95 = arith.mulf %92, %94 : vector<32x256xf32>
    %96 = arith.truncf %95 : vector<32x256xf32> to vector<32x256xbf16>
    %c192_58 = arith.constant 192 : index
    %c0_59 = arith.constant 0 : index
    %97 = vector.load %arg12[%c192_58, %c0_59] : memref<288x256xbf16, #tpu.memory_space<vmem>>, vector<32x256xbf16>
    tpu.vector_store %arg12[%c192_58, %c0_59], %96 {strides = array<i32>} : memref<288x256xbf16, #tpu.memory_space<vmem>>, vector<32x256xbf16>,
    %c240_i32_60 = arith.constant 240 : i32
    %98 = tpu.dynamic_rotate %59 by %c240_i32_60 dim 1 : vector<32x256xf32>, i32 -> vector<32x256xf32>
    %c7_61 = arith.constant 7 : index
    %c0_62 = arith.constant 0 : index
    %99 = vector.load %arg2[%c7_61, %c0_62] : memref<9x256xf32, #tpu.memory_space<vmem>>, vector<1x256xf32>
    %100 = vector.broadcast %99 : vector<1x256xf32> to vector<32x256xf32>
    %101 = arith.mulf %98, %100 : vector<32x256xf32>
    %102 = arith.truncf %101 : vector<32x256xf32> to vector<32x256xbf16>
    %c224_63 = arith.constant 224 : index
    %c0_64 = arith.constant 0 : index
    %103 = vector.load %arg12[%c224_63, %c0_64] : memref<288x256xbf16, #tpu.memory_space<vmem>>, vector<32x256xbf16>
    tpu.vector_store %arg12[%c224_63, %c0_64], %102 {strides = array<i32>} : memref<288x256xbf16, #tpu.memory_space<vmem>>, vector<32x256xbf16>,
    %c239_i32_65 = arith.constant 239 : i32
    %104 = tpu.dynamic_rotate %59 by %c239_i32_65 dim 1 : vector<32x256xf32>, i32 -> vector<32x256xf32>
    %c8_66 = arith.constant 8 : index
    %c0_67 = arith.constant 0 : index
    %105 = vector.load %arg2[%c8_66, %c0_67] : memref<9x256xf32, #tpu.memory_space<vmem>>, vector<1x256xf32>
    %106 = vector.broadcast %105 : vector<1x256xf32> to vector<32x256xf32>
    %107 = arith.mulf %104, %106 : vector<32x256xf32>
    %108 = arith.truncf %107 : vector<32x256xf32> to vector<32x256xbf16>
    %c256_68 = arith.constant 256 : index
    %c0_69 = arith.constant 0 : index
    %109 = vector.load %arg12[%c256_68, %c0_69] : memref<288x256xbf16, #tpu.memory_space<vmem>>, vector<32x256xbf16>
    tpu.vector_store %arg12[%c256_68, %c0_69], %108 {strides = array<i32>} : memref<288x256xbf16, #tpu.memory_space<vmem>>, vector<32x256xbf16>,
    %c0_70 = arith.constant 0 : index
    %c0_71 = arith.constant 0 : index
    %110 = vector.load %arg5[%c0_70, %c0_71] : memref<32x288xbf16, #tpu.memory_space<vmem>>, vector<32x288xbf16>
    %c0_72 = arith.constant 0 : index
    %c0_73 = arith.constant 0 : index
    %111 = vector.load %arg12[%c0_72, %c0_73] : memref<288x256xbf16, #tpu.memory_space<vmem>>, vector<288x256xbf16>
    %cst_74 = arith.constant dense<0.000000e+00> : vector<32x256xf32>
    %112 = tpu.matmul %110, %111, %cst_74 {dimension_numbers = #tpu.dot_dimension_numbers<[1], [0], [0], [1], [0, 0, 1, 1], [], []>} : vector<32x288xbf16>, vector<288x256xbf16>, vector<32x256xf32> -> vector<32x256xf32>
    %c0_75 = arith.constant 0 : index
    %c0_76 = arith.constant 0 : index
    %113 = vector.load %arg6[%c0_75, %c0_76] : memref<32x1xf32, #tpu.memory_space<vmem>>, vector<32x1xf32>
    %114 = vector.broadcast %113 : vector<32x1xf32> to vector<32x256xf32>
    %115 = arith.addf %112, %114 : vector<32x256xf32>
    %cst_77 = arith.constant dense<0.000000e+00> : vector<32xf32>
    %116 = vector.multi_reduction <add>, %115, %cst_77 [1] : vector<32x256xf32> to vector<32xf32>
    %117 = vector.shape_cast %116 : vector<32xf32> to vector<32x1xf32>
    %cst_78 = arith.constant 3.906250e-03 : f32
    %118 = vector.broadcast %cst_78 : f32 to vector<32x1xf32>
    %119 = arith.mulf %117, %118 : vector<32x1xf32>
    %c0_79 = arith.constant 0 : index
    %c0_80 = arith.constant 0 : index
    %120 = vector.load %arg7[%c0_79, %c0_80] : memref<2x32xf32, #tpu.memory_space<vmem>>, vector<2x32xf32>
    %cst_81 = arith.constant dense<0.000000e+00> : vector<2x1xf32>
    %121 = tpu.matmul %120, %119, %cst_81 {dimension_numbers = #tpu.dot_dimension_numbers<[1], [0], [0], [1], [0, 0, 1, 1], [], []>} : vector<2x32xf32>, vector<32x1xf32>, vector<2x1xf32> -> vector<2x1xf32>
    %c0_82 = arith.constant 0 : index
    %c0_83 = arith.constant 0 : index
    %122 = vector.load %arg8[%c0_82, %c0_83] : memref<2x1xf32, #tpu.memory_space<vmem>>, vector<2x1xf32>
    %123 = arith.addf %121, %122 : vector<2x1xf32>
    %cst_84 = arith.constant 0.000000e+00 : f32
    %124 = vector.broadcast %cst_84 : f32 to vector<2x1xf32>
    %125 = arith.maximumf %123, %124 : vector<2x1xf32>
    %c0_85 = arith.constant 0 : index
    %c0_86 = arith.constant 0 : index
    %126 = vector.load %arg9[%c0_85, %c0_86] : memref<32x2xf32, #tpu.memory_space<vmem>>, vector<32x2xf32>
    %cst_87 = arith.constant dense<0.000000e+00> : vector<32x1xf32>
    %127 = tpu.matmul %126, %125, %cst_87 {dimension_numbers = #tpu.dot_dimension_numbers<[1], [0], [0], [1], [0, 0, 1, 1], [], []>} : vector<32x2xf32>, vector<2x1xf32>, vector<32x1xf32> -> vector<32x1xf32>
    %c0_88 = arith.constant 0 : index
    %c0_89 = arith.constant 0 : index
    %128 = vector.load %arg10[%c0_88, %c0_89] : memref<32x1xf32, #tpu.memory_space<vmem>>, vector<32x1xf32>
    %129 = arith.addf %127, %128 : vector<32x1xf32>
    %cst_90 = arith.constant 0.000000e+00 : f32
    %130 = vector.broadcast %cst_90 : f32 to vector<32x1xf32>
    %131 = arith.subf %130, %129 : vector<32x1xf32>
    %132 = math.exp %131 : vector<32x1xf32>
    %cst_91 = arith.constant 1.000000e+00 : f32
    %133 = vector.broadcast %cst_91 : f32 to vector<32x1xf32>
    %134 = arith.addf %133, %132 : vector<32x1xf32>
    %cst_92 = arith.constant 1.000000e+00 : f32
    %135 = vector.broadcast %cst_92 : f32 to vector<32x1xf32>
    %136 = arith.divf %135, %134 : vector<32x1xf32>
    %c0_93 = arith.constant 0 : index
    %c0_94 = arith.constant 0 : index
    %c0_95 = arith.constant 0 : index
    %137 = vector.load %arg1[%c0_93, %c0_94, %c0_95] : memref<1x32x256xf32, #tpu.memory_space<vmem>>, vector<1x32x256xf32>
    %138 = vector.shape_cast %137 : vector<1x32x256xf32> to vector<32x256xf32>
    %139 = vector.broadcast %136 : vector<32x1xf32> to vector<32x256xf32>
    %140 = arith.mulf %115, %139 : vector<32x256xf32>
    %141 = arith.addf %138, %140 : vector<32x256xf32>
    %c0_96 = arith.constant 0 : index
    %c0_97 = arith.constant 0 : index
    %c0_98 = arith.constant 0 : index
    %142 = vector.load %arg11[%c0_96, %c0_97, %c0_98] : memref<1x32x256xf32, #tpu.memory_space<vmem>>, vector<1x32x256xf32>
    %143 = vector.shape_cast %142 : vector<1x32x256xf32> to vector<32x256xf32>
    %144 = vector.shape_cast %141 : vector<32x256xf32> to vector<1x32x256xf32>
    tpu.vector_store %arg11[%c0_96, %c0_97, %c0_98], %144 {strides = array<i32>} : memref<1x32x256xf32, #tpu.memory_space<vmem>>, vector<1x32x256xf32>,
    return
  }
  func.func @transform_0(%arg0: i32) -> (i32, i32, i32) {
    %c0_i32 = arith.constant 0 : i32
    %c0_i32_0 = arith.constant 0 : i32
    %c0_i32_1 = arith.constant 0 : i32
    return %arg0, %c0_i32, %c0_i32_0 : i32, i32, i32
  }
  func.func @transform_1(%arg0: i32) -> (i32, i32) {
    %c0_i32 = arith.constant 0 : i32
    %c0_i32_0 = arith.constant 0 : i32
    %c0_i32_1 = arith.constant 0 : i32
    return %c0_i32, %c0_i32_0 : i32, i32
  }
  func.func @transform_2(%arg0: i32) -> (i32, i32) {
    %c0_i32 = arith.constant 0 : i32
    %c0_i32_0 = arith.constant 0 : i32
    %c0_i32_1 = arith.constant 0 : i32
    return %c0_i32, %c0_i32_0 : i32, i32
  }
  func.func @transform_3(%arg0: i32) -> (i32, i32) {
    %c0_i32 = arith.constant 0 : i32
    %c0_i32_0 = arith.constant 0 : i32
    %c0_i32_1 = arith.constant 0 : i32
    return %c0_i32, %c0_i32_0 : i32, i32
  }
  func.func @transform_4(%arg0: i32) -> (i32, i32) {
    %c0_i32 = arith.constant 0 : i32
    %c0_i32_0 = arith.constant 0 : i32
    %c0_i32_1 = arith.constant 0 : i32
    return %c0_i32, %c0_i32_0 : i32, i32
  }
  func.func @transform_5(%arg0: i32) -> (i32, i32) {
    %c0_i32 = arith.constant 0 : i32
    %c0_i32_0 = arith.constant 0 : i32
    %c0_i32_1 = arith.constant 0 : i32
    return %c0_i32, %c0_i32_0 : i32, i32
  }
  func.func @transform_6(%arg0: i32) -> (i32, i32) {
    %c0_i32 = arith.constant 0 : i32
    %c0_i32_0 = arith.constant 0 : i32
    %c0_i32_1 = arith.constant 0 : i32
    return %c0_i32, %c0_i32_0 : i32, i32
  }
  func.func @transform_7(%arg0: i32) -> (i32, i32) {
    %c0_i32 = arith.constant 0 : i32
    %c0_i32_0 = arith.constant 0 : i32
    %c0_i32_1 = arith.constant 0 : i32
    return %c0_i32, %c0_i32_0 : i32, i32
  }
  func.func @transform_8(%arg0: i32) -> (i32, i32) {
    %c0_i32 = arith.constant 0 : i32
    %c0_i32_0 = arith.constant 0 : i32
    %c0_i32_1 = arith.constant 0 : i32
    return %c0_i32, %c0_i32_0 : i32, i32
  }
  func.func @transform_9(%arg0: i32) -> (i32, i32) {
    %c0_i32 = arith.constant 0 : i32
    %c0_i32_0 = arith.constant 0 : i32
    %c0_i32_1 = arith.constant 0 : i32
    return %c0_i32, %c0_i32_0 : i32, i32
  }
  func.func @transform_10(%arg0: i32) -> (i32, i32, i32) {
    %c0_i32 = arith.constant 0 : i32
    %c0_i32_0 = arith.constant 0 : i32
    %c0_i32_1 = arith.constant 0 : i32
    return %arg0, %c0_i32, %c0_i32_0 : i32, i32, i32
  }
}

</mosaic_0001>

<llo_original>
// kernel: rcab_forward.1
$region0: #{rcab_forward.1}
  #allocation0 [shape = 'u32[]', space=smem, size = 0x4, offset = 0x4, fixed_abs, tag = 'smem constant byte address 0x4 - core index']
  #allocation1 [shape = 'u32[72,128]{1,0:T(1,128)}', space=vmem, size = 0x9000, scoped, tag = 'internal scratch']
  #allocation2 [shape = 'bf16[288,256]{1,0:T(8,128)(2,1)}', space=vmem, size = 0x24000, scoped, tag = 'scratch operand']
  %s0 = inlined_call_operand.vmem [shape: f32[2,32,256], index: 0, kind: input, shape index: {}]
  %s1 = inlined_call_operand.vmem [shape: f32[9,256], index: 1, kind: input, shape index: {}]
  %s2 = inlined_call_operand.vmem [shape: bf16[32,288], index: 2, kind: input, shape index: {}]
  %s3 = inlined_call_operand.vmem [shape: f32[32,1], index: 3, kind: input, shape index: {}]
  %s4 = inlined_call_operand.vmem [shape: bf16[32,288], index: 4, kind: input, shape index: {}]
  %s5 = inlined_call_operand.vmem [shape: f32[32,1], index: 5, kind: input, shape index: {}]
  %s6 = inlined_call_operand.vmem [shape: f32[2,32], index: 6, kind: input, shape index: {}]
  %s7 = inlined_call_operand.vmem [shape: f32[2,1], index: 7, kind: input, shape index: {}]
  %s8 = inlined_call_operand.vmem [shape: f32[32,2], index: 8, kind: input, shape index: {}]
  %s9 = inlined_call_operand.vmem [shape: f32[32,1], index: 9, kind: input, shape index: {}]
  %s10 = inlined_call_operand.vmem [shape: f32[2,32,256], index: 10, kind: output, shape index: {}]
  %s11 = sld [smem:[#allocation0]]
  $region73: #{rcab_forward.1} parent=0
    _
  %s13 = ssub.s32 1, %s11
  %s14 = scalar_select 0, %s13, %s11
  loop: start=0, step=1, limit=4
  $region2: #{rcab_forward.1} parent=0 // loop_pre_header
    _
  $region3: #{rcab_forward.1} parent=0 // loop_header
    %s16 = sphi 0, %s20
    %p17 = scmp.ge.s32.totalorder %s16, 4
    %s26 = sphi 0, %s28
    %s29 = sphi 0, %s26
    %s30 = sphi 0, %s29
    %s46 = sphi 0, %s30
    %s50 = sphi 0, %s50
    %s52 = sphi 0, %s50
    %s53 = sphi 0, %s52
    %s67 = sphi 0, %s53
    %s71 = sphi 0, %s71
    %s73 = sphi 0, %s71
    %s74 = sphi 0, %s73
    %s88 = sphi 0, %s74
    %s92 = sphi 0, %s92
    %s94 = sphi 0, %s92
    %s95 = sphi 0, %s94
    %s109 = sphi 0, %s95
    %s113 = sphi 0, %s113
    %s115 = sphi 0, %s113
    %s116 = sphi 0, %s115
    %s130 = sphi 0, %s116
    %s134 = sphi 0, %s134
    %s136 = sphi 0, %s134
    %s137 = sphi 0, %s136
    %s151 = sphi 0, %s137
    %s155 = sphi 0, %s155
    %s157 = sphi 0, %s155
    %s158 = sphi 0, %s157
    %s172 = sphi 0, %s158
    %s176 = sphi 0, %s176
    %s178 = sphi 0, %s176
    %s179 = sphi 0, %s178
    %s193 = sphi 0, %s179
    %s197 = sphi 0, %s197
    %s199 = sphi 0, %s197
    %s200 = sphi 0, %s199
    %s214 = sphi 0, %s200
    %s218 = sphi 0, %s218
    %s220 = sphi 0, %s218
    %s221 = sphi 0, %s220
    %s235 = sphi 0, %s221
    %s241 = sphi 0, %s243
    %s244 = sphi 0, %s241
    %s245 = sphi 0, %s244
    %s261 = sphi 0, %s245
  $region4: #{rcab_forward.1} parent=0 // loop_header_branch
    %19 = sbr.rel (%p17) target = $region8
  $region5: #{rcab_forward.1} parent=0 // loop_body
    %s21 = ssub.s32 %s16, 1
    %s22 = ssub.s32 %s16, 2
    %s23 = sadd.s32 %s16, 1
    %s24 = ssub.s32 %s16, %s23
    %p25 = scmp.eq.s32.totalorder %s24, 0
    %s27 = sadd.s32 %s26, 1
    %s28 = scalar_select %p25, %s26, %s27
    %p31 = pneg %p25
    %p32 = scmp.eq.s32.totalorder %s16, 1
    %p33 = por %p31, %p32
    %p34 = scmp.ne.s32.totalorder %s26, %s29
    %p35 = scmp.eq.s32.totalorder %s16, 0
    %p36 = por %p34, %p35
    %p37 = scmp.ne.s32.totalorder %s26, %s29
    %p38 = scmp.eq.s32.totalorder %s21, 1
    %p39 = por %p37, %p38
    %p40 = scmp.ne.s32.totalorder %s29, %s30
    %p41 = scmp.eq.s32.totalorder %s21, 0
    %p42 = por %p40, %p41
    %p43 = scmp.ne.s32.totalorder %s29, %s30
    %p44 = scmp.eq.s32.totalorder %s22, 1
    %p45 = por %p43, %p44
    %p47 = scmp.ne.s32.totalorder %s30, %s46
    %p48 = scmp.eq.s32.totalorder %s22, 0
    %p49 = por %p47, %p48
    %s51 = sadd.s32 %s50, 1
    %p54 = scmp.eq.s32.totalorder %s16, 1
    %p55 = scmp.ne.s32.totalorder %s50, %s52
    %p56 = scmp.eq.s32.totalorder %s16, 0
    %p57 = por %p55, %p56
    %p58 = scmp.ne.s32.totalorder %s50, %s52
    %p59 = scmp.eq.s32.totalorder %s21, 1
    %p60 = por %p58, %p59
    %p61 = scmp.ne.s32.totalorder %s52, %s53
    %p62 = scmp.eq.s32.totalorder %s21, 0
    %p63 = por %p61, %p62
    %p64 = scmp.ne.s32.totalorder %s52, %s53
    %p65 = scmp.eq.s32.totalorder %s22, 1
    %p66 = por %p64, %p65
    %p68 = scmp.ne.s32.totalorder %s53, %s67
    %p69 = scmp.eq.s32.totalorder %s22, 0
    %p70 = por %p68, %p69
    %s72 = sadd.s32 %s71, 1
    %p75 = scmp.eq.s32.totalorder %s16, 1
    %p76 = scmp.ne.s32.totalorder %s71, %s73
    %p77 = scmp.eq.s32.totalorder %s16, 0
    %p78 = por %p76, %p77
    %p79 = scmp.ne.s32.totalorder %s71, %s73
    %p80 = scmp.eq.s32.totalorder %s21, 1
    %p81 = por %p79, %p80
    %p82 = scmp.ne.s32.totalorder %s73, %s74
    %p83 = scmp.eq.s32.totalorder %s21, 0
    %p84 = por %p82, %p83
    %p85 = scmp.ne.s32.totalorder %s73, %s74
    %p86 = scmp.eq.s32.totalorder %s22, 1
    %p87 = por %p85, %p86
    %p89 = scmp.ne.s32.totalorder %s74, %s88
    %p90 = scmp.eq.s32.totalorder %s22, 0
    %p91 = por %p89, %p90
    %s93 = sadd.s32 %s92, 1
    %p96 = scmp.eq.s32.totalorder %s16, 1
    %p97 = scmp.ne.s32.totalorder %s92, %s94
    %p98 = scmp.eq.s32.totalorder %s16, 0
    %p99 = por %p97, %p98
    %p100 = scmp.ne.s32.totalorder %s92, %s94
    %p101 = scmp.eq.s32.totalorder %s21, 1
    %p102 = por %p100, %p101
    %p103 = scmp.ne.s32.totalorder %s94, %s95
    %p104 = scmp.eq.s32.totalorder %s21, 0
    %p105 = por %p103, %p104
    %p106 = scmp.ne.s32.totalorder %s94, %s95
    %p107 = scmp.eq.s32.totalorder %s22, 1
    %p108 = por %p106, %p107
    %p110 = scmp.ne.s32.totalorder %s95, %s109
    %p111 = scmp.eq.s32.totalorder %s22, 0
    %p112 = por %p110, %p111
    %s114 = sadd.s32 %s113, 1
    %p117 = scmp.eq.s32.totalorder %s16, 1
    %p118 = scmp.ne.s32.totalorder %s113, %s115
    %p119 = scmp.eq.s32.totalorder %s16, 0
    %p120 = por %p118, %p119
    %p121 = scmp.ne.s32.totalorder %s113, %s115
    %p122 = scmp.eq.s32.totalorder %s21, 1
    %p123 = por %p121, %p122
    %p124 = scmp.ne.s32.totalorder %s115, %s116
    %p125 = scmp.eq.s32.totalorder %s21, 0
    %p126 = por %p124, %p125
    %p127 = scmp.ne.s32.totalorder %s115, %s116
    %p128 = scmp.eq.s32.totalorder %s22, 1
    %p129 = por %p127, %p128
    %p131 = scmp.ne.s32.totalorder %s116, %s130
    %p132 = scmp.eq.s32.totalorder %s22, 0
    %p133 = por %p131, %p132
    %s135 = sadd.s32 %s134, 1
    %p138 = scmp.eq.s32.totalorder %s16, 1
    %p139 = scmp.ne.s32.totalorder %s134, %s136
    %p140 = scmp.eq.s32.totalorder %s16, 0
    %p141 = por %p139, %p140
    %p142 = scmp.ne.s32.totalorder %s134, %s136
    %p143 = scmp.eq.s32.totalorder %s21, 1
    %p144 = por %p142, %p143
    %p145 = scmp.ne.s32.totalorder %s136, %s137
    %p146 = scmp.eq.s32.totalorder %s21, 0
    %p147 = por %p145, %p146
    %p148 = scmp.ne.s32.totalorder %s136, %s137
    %p149 = scmp.eq.s32.totalorder %s22, 1
    %p150 = por %p148, %p149
    %p152 = scmp.ne.s32.totalorder %s137, %s151
    %p153 = scmp.eq.s32.totalorder %s22, 0
    %p154 = por %p152, %p153
    %s156 = sadd.s32 %s155, 1
    %p159 = scmp.eq.s32.totalorder %s16, 1
    %p160 = scmp.ne.s32.totalorder %s155, %s157
    %p161 = scmp.eq.s32.totalorder %s16, 0
    %p162 = por %p160, %p161
    %p163 = scmp.ne.s32.totalorder %s155, %s157
    %p164 = scmp.eq.s32.totalorder %s21, 1
    %p165 = por %p163, %p164
    %p166 = scmp.ne.s32.totalorder %s157, %s158
    %p167 = scmp.eq.s32.totalorder %s21, 0
    %p168 = por %p166, %p167
    %p169 = scmp.ne.s32.totalorder %s157, %s158
    %p170 = scmp.eq.s32.totalorder %s22, 1
    %p171 = por %p169, %p170
    %p173 = scmp.ne.s32.totalorder %s158, %s172
    %p174 = scmp.eq.s32.totalorder %s22, 0
    %p175 = por %p173, %p174
    %s177 = sadd.s32 %s176, 1
    %p180 = scmp.eq.s32.totalorder %s16, 1
    %p181 = scmp.ne.s32.totalorder %s176, %s178
    %p182 = scmp.eq.s32.totalorder %s16, 0
    %p183 = por %p181, %p182
    %p184 = scmp.ne.s32.totalorder %s176, %s178
    %p185 = scmp.eq.s32.totalorder %s21, 1
    %p186 = por %p184, %p185
    %p187 = scmp.ne.s32.totalorder %s178, %s179
    %p188 = scmp.eq.s32.totalorder %s21, 0
    %p189 = por %p187, %p188
    %p190 = scmp.ne.s32.totalorder %s178, %s179
    %p191 = scmp.eq.s32.totalorder %s22, 1
    %p192 = por %p190, %p191
    %p194 = scmp.ne.s32.totalorder %s179, %s193
    %p195 = scmp.eq.s32.totalorder %s22, 0
    %p196 = por %p194, %p195
    %s198 = sadd.s32 %s197, 1
    %p201 = scmp.eq.s32.totalorder %s16, 1
    %p202 = scmp.ne.s32.totalorder %s197, %s199
    %p203 = scmp.eq.s32.totalorder %s16, 0
    %p204 = por %p202, %p203
    %p205 = scmp.ne.s32.totalorder %s197, %s199
    %p206 = scmp.eq.s32.totalorder %s21, 1
    %p207 = por %p205, %p206
    %p208 = scmp.ne.s32.totalorder %s199, %s200
    %p209 = scmp.eq.s32.totalorder %s21, 0
    %p210 = por %p208, %p209
    %p211 = scmp.ne.s32.totalorder %s199, %s200
    %p212 = scmp.eq.s32.totalorder %s22, 1
    %p213 = por %p211, %p212
    %p215 = scmp.ne.s32.totalorder %s200, %s214
    %p216 = scmp.eq.s32.totalorder %s22, 0
    %p217 = por %p215, %p216
    %s219 = sadd.s32 %s218, 1
    %p222 = scmp.eq.s32.totalorder %s16, 1
    %p223 = scmp.ne.s32.totalorder %s218, %s220
    %p224 = scmp.eq.s32.totalorder %s16, 0
    %p225 = por %p223, %p224
    %p226 = scmp.ne.s32.totalorder %s218, %s220
    %p227 = scmp.eq.s32.totalorder %s21, 1
    %p228 = por %p226, %p227
    %p229 = scmp.ne.s32.totalorder %s220, %s221
    %p230 = scmp.eq.s32.totalorder %s21, 0
    %p231 = por %p229, %p230
    %p232 = scmp.ne.s32.totalorder %s220, %s221
    %p233 = scmp.eq.s32.totalorder %s22, 1
    %p234 = por %p232, %p233
    %p236 = scmp.ne.s32.totalorder %s221, %s235
    %p237 = scmp.eq.s32.totalorder %s22, 0
    %p238 = por %p236, %p237
    %s239 = ssub.s32 %s16, %s23
    %p240 = scmp.eq.s32.totalorder %s239, 0
    %s242 = sadd.s32 %s241, 1
    %s243 = scalar_select %p240, %s241, %s242
    %p246 = pneg %p240
    %p247 = scmp.eq.s32.totalorder %s16, 1
    %p248 = por %p246, %p247
    %p249 = scmp.ne.s32.totalorder %s241, %s244
    %p250 = scmp.eq.s32.totalorder %s16, 0
    %p251 = por %p249, %p250
    %p252 = scmp.ne.s32.totalorder %s241, %s244
    %p253 = scmp.eq.s32.totalorder %s21, 1
    %p254 = por %p252, %p253
    %p255 = scmp.ne.s32.totalorder %s244, %s245
    %p256 = scmp.eq.s32.totalorder %s21, 0
    %p257 = por %p255, %p256
    %p258 = scmp.ne.s32.totalorder %s244, %s245
    %p259 = scmp.eq.s32.totalorder %s22, 1
    %p260 = por %p258, %p259
    %p262 = scmp.ne.s32.totalorder %s245, %s261
    %p263 = scmp.eq.s32.totalorder %s22, 0
    %p264 = por %p262, %p263
    %p265 = scmp.le.s32.totalorder 1, %s16
    %p266 = scmp.lt.s32.totalorder %s16, 3
    %p267 = pnand %p265, %p266
    %p268 = pneg %p267
    // Predicated region
    $region9: #{rcab_forward.1} parent=5 // pred_check
      _
    $region10: #{rcab_forward.1} parent=5 // pred_check_branch
      %270 = sbr.rel (%p267) target = $region12
    $region11: #{rcab_forward.1} parent=5 // pred_region
      %s271 = ssub.s32 %s16, 1
      // Predicated region
      $region13: #{rcab_forward.1} parent=11 // pred_check
        %p272 = pneg %p63
      $region14: #{rcab_forward.1} parent=11 // pred_check_branch
        %274 = sbr.rel (%p272) target = $region16
      $region15: #{rcab_forward.1} parent=11 // pred_region
        _
      $region16: #{rcab_forward.1} parent=11 // pred_fallthru
        _
      // Predicated region
      $region17: #{rcab_forward.1} parent=11 // pred_check
        %p275 = pneg %p84
      $region18: #{rcab_forward.1} parent=11 // pred_check_branch
        %277 = sbr.rel (%p275) target = $region20
      $region19: #{rcab_forward.1} parent=11 // pred_region
        _
      $region20: #{rcab_forward.1} parent=11 // pred_fallthru
        _
      // Predicated region
      $region21: #{rcab_forward.1} parent=11 // pred_check
        %p278 = pneg %p105
      $region22: #{rcab_forward.1} parent=11 // pred_check_branch
        %280 = sbr.rel (%p278) target = $region24
      $region23: #{rcab_forward.1} parent=11 // pred_region
        _
      $region24: #{rcab_forward.1} parent=11 // pred_fallthru
        _
      // Predicated region
      $region25: #{rcab_forward.1} parent=11 // pred_check
        %p281 = pneg %p126
      $region26: #{rcab_forward.1} parent=11 // pred_check_branch
        %283 = sbr.rel (%p281) target = $region28
      $region27: #{rcab_forward.1} parent=11 // pred_region
        _
      $region28: #{rcab_forward.1} parent=11 // pred_fallthru
        _
      // Predicated region
      $region29: #{rcab_forward.1} parent=11 // pred_check
        %p284 = pneg %p147
      $region30: #{rcab_forward.1} parent=11 // pred_check_branch
        %286 = sbr.rel (%p284) target = $region32
      $region31: #{rcab_forward.1} parent=11 // pred_region
        _
      $region32: #{rcab_forward.1} parent=11 // pred_fallthru
        _
      // Predicated region
      $region33: #{rcab_forward.1} parent=11 // pred_check
        %p287 = pneg %p168
      $region34: #{rcab_forward.1} parent=11 // pred_check_branch
        %289 = sbr.rel (%p287) target = $region36
      $region35: #{rcab_forward.1} parent=11 // pred_region
        _
      $region36: #{rcab_forward.1} parent=11 // pred_fallthru
        _
      // Predicated region
      $region37: #{rcab_forward.1} parent=11 // pred_check
        %p290 = pneg %p189
      $region38: #{rcab_forward.1} parent=11 // pred_check_branch
        %292 = sbr.rel (%p290) target = $region40
      $region39: #{rcab_forward.1} parent=11 // pred_region
        _
      $region40: #{rcab_forward.1} parent=11 // pred_fallthru
        _
      // Predicated region
      $region41: #{rcab_forward.1} parent=11 // pred_check
        %p293 = pneg %p210
      $region42: #{rcab_forward.1} parent=11 // pred_check_branch
        %295 = sbr.rel (%p293) target = $region44
      $region43: #{rcab_forward.1} parent=11 // pred_region
        _
      $region44: #{rcab_forward.1} parent=11 // pred_fallthru
        _
      // Predicated region
      $region45: #{rcab_forward.1} parent=11 // pred_check
        %p296 = pneg %p231
      $region46: #{rcab_forward.1} parent=11 // pred_check_branch
        %298 = sbr.rel (%p296) target = $region48
      $region47: #{rcab_forward.1} parent=11 // pred_region
        _
      $region48: #{rcab_forward.1} parent=11 // pred_fallthru
        _
    $region12: #{rcab_forward.1} parent=5 // pred_fallthru
      _
    %p299 = scmp.lt.s32.totalorder %s16, 2
    // Predicated region
    $region49: #{rcab_forward.1} parent=5 // pred_check
      %p300 = pneg %p299
    $region50: #{rcab_forward.1} parent=5 // pred_check_branch
      %302 = sbr.rel (%p300) target = $region52
    $region51: #{rcab_forward.1} parent=5 // pred_region
      // Predicated region
      $region53: #{rcab_forward.1} parent=51 // pred_check
        %p303 = pneg %p36
      $region54: #{rcab_forward.1} parent=51 // pred_check_branch
        %305 = sbr.rel (%p303) target = $region56
      $region55: #{rcab_forward.1} parent=51 // pred_region
        %p306 = scmp.lt.s32.totalorder %s16, 1
        %s307 = scalar_select %p306, %s16, 1
        %s308 = smul.addr %s307, 8
        %s309 = smul.addr %s308, 8
        %s310 = scalar_lea.vmem %s0, %s309
      $region56: #{rcab_forward.1} parent=51 // pred_fallthru
        _
    $region52: #{rcab_forward.1} parent=5 // pred_fallthru
      _
    %p311 = scmp.le.s32.totalorder 1, %s16
    %p312 = scmp.lt.s32.totalorder %s16, 3
    %p313 = pnand %p311, %p312
    %p314 = pneg %p313
    // Predicated region
    $region57: #{rcab_forward.1} parent=5 // pred_check
      _
    $region58: #{rcab_forward.1} parent=5 // pred_check_branch
      %316 = sbr.rel (%p313) target = $region60
    $region59: #{rcab_forward.1} parent=5 // pred_region
      %s317 = ssub.s32 %s16, 1
      %p318 = scmp.lt.s32.totalorder %s21, 1
      %s319 = scalar_select %p318, %s21, 1
      %s320 = smul.addr %s319, 8
      %s321 = smul.addr %s320, 8
      %s322 = scalar_lea.vmem %s0, %s321
      %p323 = pneg %p42
      %p324 = pneg %p39
      %p325 = pneg %p63
      %p326 = pneg %p60
      %p327 = pneg %p84
      %p328 = pneg %p81
      %p329 = pneg %p105
      %p330 = pneg %p102
      %p331 = pneg %p126
      %p332 = pneg %p123
      %p333 = pneg %p147
      %p334 = pneg %p144
      %p335 = pneg %p168
      %p336 = pneg %p165
      %p337 = pneg %p189
      %p338 = pneg %p186
      %p339 = pneg %p210
      %p340 = pneg %p207
      %p341 = pneg %p231
      %p342 = pneg %p228
      %p343 = pneg %p257
      %p344 = pneg %p254
      %p345 = scmp.lt.s32.totalorder %s21, 1
      %s346 = scalar_select %p345, %s21, 1
      %s347 = smul.addr %s346, 8
      %s348 = smul.addr %s347, 8
      %s349 = scalar_lea.vmem %s10, %s348
      %p350 = scmp.lt.s32.totalorder %s21, 1
      %s351 = scalar_select %p350, %s21, 1
      %s352 = smul.addr %s351, 8
      %s353 = smul.addr %s352, 8
      %s354 = scalar_lea.vmem %s0, %s353
      %p355 = scmp.lt.s32.totalorder %s21, 1
      %s356 = scalar_select %p355, %s21, 1
      %s357 = smul.addr %s356, 8
      %s358 = smul.addr %s357, 8
      %s359 = scalar_lea.vmem %s10, %s358
      %v361 = vld [vmem:[%s354] sm:$0xff]
      %v362 = vld [vmem:[%s354 + $0x8] sm:$0xff]
      %v363 = vld [vmem:[%s354 + $0x10] sm:$0xff]
      %v364 = vld [vmem:[%s354 + $0x18] sm:$0xff]
      %v365 = vld [vmem:[%s354 + $0x20] sm:$0xff]
      %v366 = vld [vmem:[%s354 + $0x28] sm:$0xff]
      %v367 = vld [vmem:[%s354 + $0x30] sm:$0xff]
      %v368 = vld [vmem:[%s354 + $0x38] sm:$0xff]
      %369 = vrot.lane.b32.xlu0 %v361, 17
      %v370 = vpop.permute.xlu0 %369
      %371 = vrot.lane.b32.xlu0 %v363, 17
      %v372 = vpop.permute.xlu0 %371
      %373 = vrot.lane.b32.xlu0 %v365, 17
      %v374 = vpop.permute.xlu0 %373
      %375 = vrot.lane.b32.xlu0 %v367, 17
      %v376 = vpop.permute.xlu0 %375
      %377 = vrot.lane.b32.xlu0 %v362, 17
      %v378 = vpop.permute.xlu0 %377
      %379 = vrot.lane.b32.xlu0 %v364, 17
      %v380 = vpop.permute.xlu0 %379
      %381 = vrot.lane.b32.xlu0 %v366, 17
      %v382 = vpop.permute.xlu0 %381
      %383 = vrot.lane.b32.xlu0 %v368, 17
      %v384 = vpop.permute.xlu0 %383
      %v385 = vlaneseq
      %v386 = vand.u32 %v385, 127
      %vm387 = vcmp.lt.s32.totalorder %v386, 17
      %v388 = vsel %vm387, %v370, %v378
      %v389 = vsel %vm387, %v372, %v380
      %v390 = vsel %vm387, %v374, %v382
      %v391 = vsel %vm387, %v376, %v384
      %v392 = vsel %vm387, %v378, %v370
      %v393 = vsel %vm387, %v380, %v372
      %v394 = vsel %vm387, %v382, %v374
      %v395 = vsel %vm387, %v384, %v376
      %v396 = vld [vmem:[%s1] ss:$8 sm:$0x3]
      %v398 = vperm.slane %v396, 0
      %v399 = vperm.slane %v396, 1
      %v402 = vmul.f32 %v392, %v398
      %v403 = vmul.f32 %v388, %v399
      %v404 = vmul.f32 %v393, %v398
      %v405 = vmul.f32 %v389, %v399
      %v406 = vmul.f32 %v394, %v398
      %v407 = vmul.f32 %v390, %v399
      %v408 = vmul.f32 %v395, %v398
      %v409 = vmul.f32 %v391, %v399
      %v410 = vpack.c.bf16 %v403, %v402
      %v411 = vpack.c.bf16 %v405, %v404
      %v412 = vpack.c.bf16 %v407, %v406
      %v413 = vpack.c.bf16 %v409, %v408
      %414 = vst [vmem:[#allocation2] sm:$0xff] %v410
      %415 = vst [vmem:[#allocation2 + $0x8] sm:$0xff] %v411
      %416 = vst [vmem:[#allocation2 + $0x10] sm:$0xff] %v412
      %417 = vst [vmem:[#allocation2 + $0x18] sm:$0xff] %v413
      %418 = vrot.lane.b32.xlu0 %v361, 16
      %v419 = vpop.permute.xlu0 %418
      %420 = vrot.lane.b32.xlu0 %v363, 16
      %v421 = vpop.permute.xlu0 %420
      %422 = vrot.lane.b32.xlu0 %v365, 16
      %v423 = vpop.permute.xlu0 %422
      %424 = vrot.lane.b32.xlu0 %v367, 16
      %v425 = vpop.permute.xlu0 %424
      %426 = vrot.lane.b32.xlu0 %v362, 16
      %v427 = vpop.permute.xlu0 %426
      %428 = vrot.lane.b32.xlu0 %v364, 16
      %v429 = vpop.permute.xlu0 %428
      %430 = vrot.lane.b32.xlu0 %v366, 16
      %v431 = vpop.permute.xlu0 %430
      %432 = vrot.lane.b32.xlu0 %v368, 16
      %v433 = vpop.permute.xlu0 %432
      %vm434 = vcmp.lt.s32.totalorder %v386, 16
      %v435 = vsel %vm434, %v419, %v427
      %v436 = vsel %vm434, %v421, %v429
      %v437 = vsel %vm434, %v423, %v431
      %v438 = vsel %vm434, %v425, %v433
      %v439 = vsel %vm434, %v427, %v419
      %v440 = vsel %vm434, %v429, %v421
      %v441 = vsel %vm434, %v431, %v423
      %v442 = vsel %vm434, %v433, %v425
      %s443 = scalar_lea.vmem %s1, 1
      %v444 = vld [vmem:[%s443] ss:$8 sm:$0x3]
      %v446 = vperm.slane %v444, 0
      %v447 = vperm.slane %v444, 1
      %v450 = vmul.f32 %v439, %v446
      %v451 = vmul.f32 %v435, %v447
      %v452 = vmul.f32 %v440, %v446
      %v453 = vmul.f32 %v436, %v447
      %v454 = vmul.f32 %v441, %v446
      %v455 = vmul.f32 %v437, %v447
      %v456 = vmul.f32 %v442, %v446
      %v457 = vmul.f32 %v438, %v447
      %v458 = vpack.c.bf16 %v451, %v450
      %v459 = vpack.c.bf16 %v453, %v452
      %v460 = vpack.c.bf16 %v455, %v454
      %v461 = vpack.c.bf16 %v457, %v456
      %462 = vst [vmem:[#allocation2 + $0x20] sm:$0xff] %v458
      %463 = vst [vmem:[#allocation2 + $0x28] sm:$0xff] %v459
      %464 = vst [vmem:[#allocation2 + $0x30] sm:$0xff] %v460
      %465 = vst [vmem:[#allocation2 + $0x38] sm:$0xff] %v461
      %466 = vrot.lane.b32.xlu0 %v361, 15
      %v467 = vpop.permute.xlu0 %466
      %468 = vrot.lane.b32.xlu0 %v363, 15
      %v469 = vpop.permute.xlu0 %468
      %470 = vrot.lane.b32.xlu0 %v365, 15
      %v471 = vpop.permute.xlu0 %470
      %472 = vrot.lane.b32.xlu0 %v367, 15
      %v473 = vpop.permute.xlu0 %472
      %474 = vrot.lane.b32.xlu0 %v362, 15
      %v475 = vpop.permute.xlu0 %474
      %476 = vrot.lane.b32.xlu0 %v364, 15
      %v477 = vpop.permute.xlu0 %476
      %478 = vrot.lane.b32.xlu0 %v366, 15
      %v479 = vpop.permute.xlu0 %478
      %480 = vrot.lane.b32.xlu0 %v368, 15
      %v481 = vpop.permute.xlu0 %480
      %vm482 = vcmp.lt.s32.totalorder %v386, 15
      %v483 = vsel %vm482, %v467, %v475
      %v484 = vsel %vm482, %v469, %v477
      %v485 = vsel %vm482, %v471, %v479
      %v486 = vsel %vm482, %v473, %v481
      %v487 = vsel %vm482, %v475, %v467
      %v488 = vsel %vm482, %v477, %v469
      %v489 = vsel %vm482, %v479, %v471
      %v490 = vsel %vm482, %v481, %v473
      %s491 = scalar_lea.vmem %s1, 2
      %v492 = vld [vmem:[%s491] ss:$8 sm:$0x3]
      %v494 = vperm.slane %v492, 0
      %v495 = vperm.slane %v492, 1
      %v498 = vmul.f32 %v487, %v494
      %v499 = vmul.f32 %v483, %v495
      %v500 = vmul.f32 %v488, %v494
      %v501 = vmul.f32 %v484, %v495
      %v502 = vmul.f32 %v489, %v494
      %v503 = vmul.f32 %v485, %v495
      %v504 = vmul.f32 %v490, %v494
      %v505 = vmul.f32 %v486, %v495
      %v506 = vpack.c.bf16 %v499, %v498
      %v507 = vpack.c.bf16 %v501, %v500
      %v508 = vpack.c.bf16 %v503, %v502
      %v509 = vpack.c.bf16 %v505, %v504
      %510 = vst [vmem:[#allocation2 + $0x40] sm:$0xff] %v506
      %511 = vst [vmem:[#allocation2 + $0x48] sm:$0xff] %v507
      %512 = vst [vmem:[#allocation2 + $0x50] sm:$0xff] %v508
      %513 = vst [vmem:[#allocation2 + $0x58] sm:$0xff] %v509
      %514 = vrot.lane.b32.xlu0 %v361, 1
      %v515 = vpop.permute.xlu0 %514
      %516 = vrot.lane.b32.xlu0 %v363, 1
      %v517 = vpop.permute.xlu0 %516
      %518 = vrot.lane.b32.xlu0 %v365, 1
      %v519 = vpop.permute.xlu0 %518
      %520 = vrot.lane.b32.xlu0 %v367, 1
      %v521 = vpop.permute.xlu0 %520
      %522 = vrot.lane.b32.xlu0 %v362, 1
      %v523 = vpop.permute.xlu0 %522
      %524 = vrot.lane.b32.xlu0 %v364, 1
      %v525 = vpop.permute.xlu0 %524
      %526 = vrot.lane.b32.xlu0 %v366, 1
      %v527 = vpop.permute.xlu0 %526
      %528 = vrot.lane.b32.xlu0 %v368, 1
      %v529 = vpop.permute.xlu0 %528
      %vm530 = vcmp.lt.s32.totalorder %v386, 1
      %v531 = vsel %vm530, %v515, %v523
      %v532 = vsel %vm530, %v517, %v525
      %v533 = vsel %vm530, %v519, %v527
      %v534 = vsel %vm530, %v521, %v529
      %v535 = vsel %vm530, %v523, %v515
      %v536 = vsel %vm530, %v525, %v517
      %v537 = vsel %vm530, %v527, %v519
      %v538 = vsel %vm530, %v529, %v521
      %s539 = scalar_lea.vmem %s1, 3
      %v540 = vld [vmem:[%s539] ss:$8 sm:$0x3]
      %v542 = vperm.slane %v540, 0
      %v543 = vperm.slane %v540, 1
      %v546 = vmul.f32 %v535, %v542
      %v547 = vmul.f32 %v531, %v543
      %v548 = vmul.f32 %v536, %v542
      %v549 = vmul.f32 %v532, %v543
      %v550 = vmul.f32 %v537, %v542
      %v551 = vmul.f32 %v533, %v543
      %v552 = vmul.f32 %v538, %v542
      %v553 = vmul.f32 %v534, %v543
      %v554 = vpack.c.bf16 %v547, %v546
      %v555 = vpack.c.bf16 %v549, %v548
      %v556 = vpack.c.bf16 %v551, %v550
      %v557 = vpack.c.bf16 %v553, %v552
      %558 = vst [vmem:[#allocation2 + $0x60] sm:$0xff] %v554
      %559 = vst [vmem:[#allocation2 + $0x68] sm:$0xff] %v555
      %560 = vst [vmem:[#allocation2 + $0x70] sm:$0xff] %v556
      %561 = vst [vmem:[#allocation2 + $0x78] sm:$0xff] %v557
      %v562 = vpack.c.bf16 %v362, %v361
      %v563 = vpack.c.bf16 %v364, %v363
      %v564 = vpack.c.bf16 %v366, %v365
      %v565 = vpack.c.bf16 %v368, %v367
      %566 = vst [vmem:[#allocation2 + $0x80] sm:$0xff] %v562
      %567 = vst [vmem:[#allocation2 + $0x88] sm:$0xff] %v563
      %568 = vst [vmem:[#allocation2 + $0x90] sm:$0xff] %v564
      %569 = vst [vmem:[#allocation2 + $0x98] sm:$0xff] %v565
      %570 = vrot.lane.b32.xlu0 %v361, 127
      %v571 = vpop.permute.xlu0 %570
      %572 = vrot.lane.b32.xlu0 %v363, 127
      %v573 = vpop.permute.xlu0 %572
      %574 = vrot.lane.b32.xlu0 %v365, 127
      %v575 = vpop.permute.xlu0 %574
      %576 = vrot.lane.b32.xlu0 %v367, 127
      %v577 = vpop.permute.xlu0 %576
      %578 = vrot.lane.b32.xlu0 %v362, 127
      %v579 = vpop.permute.xlu0 %578
      %580 = vrot.lane.b32.xlu0 %v364, 127
      %v581 = vpop.permute.xlu0 %580
      %582 = vrot.lane.b32.xlu0 %v366, 127
      %v583 = vpop.permute.xlu0 %582
      %584 = vrot.lane.b32.xlu0 %v368, 127
      %v585 = vpop.permute.xlu0 %584
      %vm586 = vcmp.lt.s32.totalorder %v386, 127
      %v587 = vsel %vm586, %v571, %v579
      %v588 = vsel %vm586, %v573, %v581
      %v589 = vsel %vm586, %v575, %v583
      %v590 = vsel %vm586, %v577, %v585
      %v591 = vsel %vm586, %v579, %v571
      %v592 = vsel %vm586, %v581, %v573
      %v593 = vsel %vm586, %v583, %v575
      %v594 = vsel %vm586, %v585, %v577
      %s595 = scalar_lea.vmem %s1, 5
      %v596 = vld [vmem:[%s595] ss:$8 sm:$0x3]
      %v598 = vperm.slane %v596, 0
      %v599 = vperm.slane %v596, 1
      %v602 = vmul.f32 %v587, %v598
      %v603 = vmul.f32 %v591, %v599
      %v604 = vmul.f32 %v588, %v598
      %v605 = vmul.f32 %v592, %v599
      %v606 = vmul.f32 %v589, %v598
      %v607 = vmul.f32 %v593, %v599
      %v608 = vmul.f32 %v590, %v598
      %v609 = vmul.f32 %v594, %v599
      %v610 = vpack.c.bf16 %v603, %v602
      %v611 = vpack.c.bf16 %v605, %v604
      %v612 = vpack.c.bf16 %v607, %v606
      %v613 = vpack.c.bf16 %v609, %v608
      %614 = vst [vmem:[#allocation2 + $0xa0] sm:$0xff] %v610
      %615 = vst [vmem:[#allocation2 + $0xa8] sm:$0xff] %v611
      %616 = vst [vmem:[#allocation2 + $0xb0] sm:$0xff] %v612
      %617 = vst [vmem:[#allocation2 + $0xb8] sm:$0xff] %v613
      %618 = vrot.lane.b32.xlu0 %v361, 113
      %v619 = vpop.permute.xlu0 %618
      %620 = vrot.lane.b32.xlu0 %v363, 113
      %v621 = vpop.permute.xlu0 %620
      %622 = vrot.lane.b32.xlu0 %v365, 113
      %v623 = vpop.permute.xlu0 %622
      %624 = vrot.lane.b32.xlu0 %v367, 113
      %v625 = vpop.permute.xlu0 %624
      %626 = vrot.lane.b32.xlu0 %v362, 113
      %v627 = vpop.permute.xlu0 %626
      %628 = vrot.lane.b32.xlu0 %v364, 113
      %v629 = vpop.permute.xlu0 %628
      %630 = vrot.lane.b32.xlu0 %v366, 113
      %v631 = vpop.permute.xlu0 %630
      %632 = vrot.lane.b32.xlu0 %v368, 113
      %v633 = vpop.permute.xlu0 %632
      %vm634 = vcmp.lt.s32.totalorder %v386, 113
      %v635 = vsel %vm634, %v619, %v627
      %v636 = vsel %vm634, %v621, %v629
      %v637 = vsel %vm634, %v623, %v631
      %v638 = vsel %vm634, %v625, %v633
      %v639 = vsel %vm634, %v627, %v619
      %v640 = vsel %vm634, %v629, %v621
      %v641 = vsel %vm634, %v631, %v623
      %v642 = vsel %vm634, %v633, %v625
      %s643 = scalar_lea.vmem %s1, 6
      %v644 = vld [vmem:[%s643] ss:$8 sm:$0x3]
      %v646 = vperm.slane %v644, 0
      %v647 = vperm.slane %v644, 1
      %v650 = vmul.f32 %v635, %v646
      %v651 = vmul.f32 %v639, %v647
      %v652 = vmul.f32 %v636, %v646
      %v653 = vmul.f32 %v640, %v647
      %v654 = vmul.f32 %v637, %v646
      %v655 = vmul.f32 %v641, %v647
      %v656 = vmul.f32 %v638, %v646
      %v657 = vmul.f32 %v642, %v647
      %v658 = vpack.c.bf16 %v651, %v650
      %v659 = vpack.c.bf16 %v653, %v652
      %v660 = vpack.c.bf16 %v655, %v654
      %v661 = vpack.c.bf16 %v657, %v656
      %662 = vst [vmem:[#allocation2 + $0xc0] sm:$0xff] %v658
      %663 = vst [vmem:[#allocation2 + $0xc8] sm:$0xff] %v659
      %664 = vst [vmem:[#allocation2 + $0xd0] sm:$0xff] %v660
      %665 = vst [vmem:[#allocation2 + $0xd8] sm:$0xff] %v661
      %666 = vrot.lane.b32.xlu0 %v361, 112
      %v667 = vpop.permute.xlu0 %666
      %668 = vrot.lane.b32.xlu0 %v363, 112
      %v669 = vpop.permute.xlu0 %668
      %670 = vrot.lane.b32.xlu0 %v365, 112
      %v671 = vpop.permute.xlu0 %670
      %672 = vrot.lane.b32.xlu0 %v367, 112
      %v673 = vpop.permute.xlu0 %672
      %674 = vrot.lane.b32.xlu0 %v362, 112
      %v675 = vpop.permute.xlu0 %674
      %676 = vrot.lane.b32.xlu0 %v364, 112
      %v677 = vpop.permute.xlu0 %676
      %678 = vrot.lane.b32.xlu0 %v366, 112
      %v679 = vpop.permute.xlu0 %678
      %680 = vrot.lane.b32.xlu0 %v368, 112
      %v681 = vpop.permute.xlu0 %680
      %vm682 = vcmp.lt.s32.totalorder %v386, 112
      %v683 = vsel %vm682, %v667, %v675
      %v684 = vsel %vm682, %v669, %v677
      %v685 = vsel %vm682, %v671, %v679
      %v686 = vsel %vm682, %v673, %v681
      %v687 = vsel %vm682, %v675, %v667
      %v688 = vsel %vm682, %v677, %v669
      %v689 = vsel %vm682, %v679, %v671
      %v690 = vsel %vm682, %v681, %v673
      %s691 = scalar_lea.vmem %s1, 7
      %v692 = vld [vmem:[%s691] ss:$8 sm:$0x3]
      %v694 = vperm.slane %v692, 0
      %v695 = vperm.slane %v692, 1
      %v698 = vmul.f32 %v683, %v694
      %v699 = vmul.f32 %v687, %v695
      %v700 = vmul.f32 %v684, %v694
      %v701 = vmul.f32 %v688, %v695
      %v702 = vmul.f32 %v685, %v694
      %v703 = vmul.f32 %v689, %v695
      %v704 = vmul.f32 %v686, %v694
      %v705 = vmul.f32 %v690, %v695
      %v706 = vpack.c.bf16 %v699, %v698
      %v707 = vpack.c.bf16 %v701, %v700
      %v708 = vpack.c.bf16 %v703, %v702
      %v709 = vpack.c.bf16 %v705, %v704
      %710 = vst [vmem:[#allocation2 + $0xe0] sm:$0xff] %v706
      %711 = vst [vmem:[#allocation2 + $0xe8] sm:$0xff] %v707
      %712 = vst [vmem:[#allocation2 + $0xf0] sm:$0xff] %v708
      %713 = vst [vmem:[#allocation2 + $0xf8] sm:$0xff] %v709
      %714 = vrot.lane.b32.xlu0 %v361, 111
      %v715 = vpop.permute.xlu0 %714
      %716 = vrot.lane.b32.xlu0 %v363, 111
      %v717 = vpop.permute.xlu0 %716
      %718 = vrot.lane.b32.xlu0 %v365, 111
      %v719 = vpop.permute.xlu0 %718
      %720 = vrot.lane.b32.xlu0 %v367, 111
      %v721 = vpop.permute.xlu0 %720
      %722 = vrot.lane.b32.xlu0 %v362, 111
      %v723 = vpop.permute.xlu0 %722
      %724 = vrot.lane.b32.xlu0 %v364, 111
      %v725 = vpop.permute.xlu0 %724
      %726 = vrot.lane.b32.xlu0 %v366, 111
      %v727 = vpop.permute.xlu0 %726
      %728 = vrot.lane.b32.xlu0 %v368, 111
      %v729 = vpop.permute.xlu0 %728
      %vm730 = vcmp.lt.s32.totalorder %v386, 111
      %v731 = vsel %vm730, %v715, %v723
      %v732 = vsel %vm730, %v717, %v725
      %v733 = vsel %vm730, %v719, %v727
      %v734 = vsel %vm730, %v721, %v729
      %v735 = vsel %vm730, %v723, %v715
      %v736 = vsel %vm730, %v725, %v717
      %v737 = vsel %vm730, %v727, %v719
      %v738 = vsel %vm730, %v729, %v721
      %s739 = scalar_lea.vmem %s1, 16
      %v740 = vld [vmem:[%s739] ss:$8 sm:$0x3]
      %v742 = vperm.slane %v740, 0
      %v743 = vperm.slane %v740, 1
      %v746 = vmul.f32 %v731, %v742
      %v747 = vmul.f32 %v735, %v743
      %v748 = vmul.f32 %v732, %v742
      %v749 = vmul.f32 %v736, %v743
      %v750 = vmul.f32 %v733, %v742
      %v751 = vmul.f32 %v737, %v743
      %v752 = vmul.f32 %v734, %v742
      %v753 = vmul.f32 %v738, %v743
      %v754 = vpack.c.bf16 %v747, %v746
      %v755 = vpack.c.bf16 %v749, %v748
      %v756 = vpack.c.bf16 %v751, %v750
      %v757 = vpack.c.bf16 %v753, %v752
      %758 = vst [vmem:[#allocation2 + $0x100] sm:$0xff] %v754
      %759 = vst [vmem:[#allocation2 + $0x108] sm:$0xff] %v755
      %760 = vst [vmem:[#allocation2 + $0x110] sm:$0xff] %v756
      %761 = vst [vmem:[#allocation2 + $0x118] sm:$0xff] %v757
      %v762 = vld [vmem:[%s2] sm:$0xff]
      %v763 = vld [vmem:[%s2 + $0x8] sm:$0xf]
      %v764 = vld [vmem:[%s2 + $0xc] sm:$0xff]
      %v765 = vld [vmem:[%s2 + $0x14] sm:$0xf]
      %v766 = vld [vmem:[%s2 + $0x18] sm:$0xff]
      %v767 = vld [vmem:[%s2 + $0x20] sm:$0xf]
      %v768 = vld [vmem:[%s2 + $0x24] sm:$0xff]
      %v769 = vld [vmem:[%s2 + $0x2c] sm:$0xf]
      %v770 = vld [vmem:[#allocation2] sm:$0xff]
      %v771 = vld [vmem:[#allocation2 + $0x8] sm:$0xff]
      %v772 = vld [vmem:[#allocation2 + $0x10] sm:$0xff]
      %v773 = vld [vmem:[#allocation2 + $0x18] sm:$0xff]
      %v774 = vld [vmem:[#allocation2 + $0x20] sm:$0xff]
      %v775 = vld [vmem:[#allocation2 + $0x28] sm:$0xff]
      %v776 = vld [vmem:[#allocation2 + $0x30] sm:$0xff]
      %v777 = vld [vmem:[#allocation2 + $0x38] sm:$0xff]
      %v778 = vld [vmem:[#allocation2 + $0x40] sm:$0xff]
      %v779 = vld [vmem:[#allocation2 + $0x48] sm:$0xff]
      %v780 = vld [vmem:[#allocation2 + $0x50] sm:$0xff]
      %v781 = vld [vmem:[#allocation2 + $0x58] sm:$0xff]
      %v782 = vld [vmem:[#allocation2 + $0x60] sm:$0xff]
      %v783 = vld [vmem:[#allocation2 + $0x68] sm:$0xff]
      %v784 = vld [vmem:[#allocation2 + $0x70] sm:$0xff]
      %v785 = vld [vmem:[#allocation2 + $0x78] sm:$0xff]
      %v786 = vld [vmem:[#allocation2 + $0x80] sm:$0xff]
      %v787 = vld [vmem:[#allocation2 + $0x88] sm:$0xff]
      %v788 = vld [vmem:[#allocation2 + $0x90] sm:$0xff]
      %v789 = vld [vmem:[#allocation2 + $0x98] sm:$0xff]
      %v790 = vld [vmem:[#allocation2 + $0xa0] sm:$0xff]
      %v791 = vld [vmem:[#allocation2 + $0xa8] sm:$0xff]
      %v792 = vld [vmem:[#allocation2 + $0xb0] sm:$0xff]
      %v793 = vld [vmem:[#allocation2 + $0xb8] sm:$0xff]
      %v794 = vld [vmem:[#allocation2 + $0xc0] sm:$0xff]
      %v795 = vld [vmem:[#allocation2 + $0xc8] sm:$0xff]
      %v796 = vld [vmem:[#allocation2 + $0xd0] sm:$0xff]
      %v797 = vld [vmem:[#allocation2 + $0xd8] sm:$0xff]
      %v798 = vld [vmem:[#allocation2 + $0xe0] sm:$0xff]
      %v799 = vld [vmem:[#allocation2 + $0xe8] sm:$0xff]
      %v800 = vld [vmem:[#allocation2 + $0xf0] sm:$0xff]
      %v801 = vld [vmem:[#allocation2 + $0xf8] sm:$0xff]
      %v802 = vld [vmem:[#allocation2 + $0x100] sm:$0xff]
      %v803 = vld [vmem:[#allocation2 + $0x108] sm:$0xff]
      %v804 = vld [vmem:[#allocation2 + $0x110] sm:$0xff]
      %v805 = vld [vmem:[#allocation2 + $0x118] sm:$0xff]
      %v806 = vld [vmem:[%s3] sm:$0xff]
      %v807 = vld [vmem:[%s3 + $0x8] sm:$0xff]
      %v808 = vld [vmem:[%s3 + $0x10] sm:$0xff]
      %v809 = vld [vmem:[%s3 + $0x18] sm:$0xff]
      %811 = vset.pattern.permute.xlu0 0
      %812 = vperm.xlu0 %811, %v806
      %v813 = vpop.permute.xlu0 %812
      %816 = vset.pattern.permute.xlu0 0
      %817 = vperm.xlu0 %816, %v807
      %v818 = vpop.permute.xlu0 %817
      %821 = vset.pattern.permute.xlu0 0
      %822 = vperm.xlu0 %821, %v808
      %v823 = vpop.permute.xlu0 %822
      %826 = vset.pattern.permute.xlu0 0
      %827 = vperm.xlu0 %826, %v809
      %v828 = vpop.permute.xlu0 %827
      %v838 = vunpack.c.l.b16 %v762
      %v839 = vunpack.c.h.b16 %v762
      %v840 = vunpack.c.l.b16 %v763
      %v841 = vunpack.c.l.b16 %v764
      %v842 = vunpack.c.h.b16 %v764
      %v843 = vunpack.c.l.b16 %v765
      %v844 = vunpack.c.l.b16 %v766
      %v845 = vunpack.c.h.b16 %v766
      %v846 = vunpack.c.l.b16 %v767
      %v847 = vunpack.c.l.b16 %v768
      %v848 = vunpack.c.h.b16 %v768
      %v849 = vunpack.c.l.b16 %v769
      %v850 = vpack.c.b16 %v841, %v838
      %v851 = vpack.c.b16 %v842, %v839
      %v852 = vpack.c.b16 %v843, %v840
      %v853 = vpack.c.b16 %v847, %v844
      %v854 = vpack.c.b16 %v848, %v845
      %v855 = vpack.c.b16 %v849, %v846
      %v896 = vunpack.c.l.b16 %v770
      %v897 = vunpack.c.h.b16 %v770
      %v898 = vunpack.c.l.b16 %v771
      %v899 = vunpack.c.h.b16 %v771
      %v900 = vunpack.c.l.b16 %v772
      %v901 = vunpack.c.h.b16 %v772
      %v902 = vunpack.c.l.b16 %v773
      %v903 = vunpack.c.h.b16 %v773
      %v904 = vunpack.c.l.b16 %v774
      %v905 = vunpack.c.h.b16 %v774
      %v906 = vunpack.c.l.b16 %v775
      %v907 = vunpack.c.h.b16 %v775
      %v908 = vunpack.c.l.b16 %v776
      %v909 = vunpack.c.h.b16 %v776
      %v910 = vunpack.c.l.b16 %v777
      %v911 = vunpack.c.h.b16 %v777
      %v912 = vunpack.c.l.b16 %v778
      %v913 = vunpack.c.h.b16 %v778
      %v914 = vunpack.c.l.b16 %v779
      %v915 = vunpack.c.h.b16 %v779
      %v916 = vunpack.c.l.b16 %v780
      %v917 = vunpack.c.h.b16 %v780
      %v918 = vunpack.c.l.b16 %v781
      %v919 = vunpack.c.h.b16 %v781
      %v920 = vunpack.c.l.b16 %v782
      %v921 = vunpack.c.h.b16 %v782
      %v922 = vunpack.c.l.b16 %v783
      %v923 = vunpack.c.h.b16 %v783
      %v924 = vunpack.c.l.b16 %v784
      %v925 = vunpack.c.h.b16 %v784
      %v926 = vunpack.c.l.b16 %v785
      %v927 = vunpack.c.h.b16 %v785
      %v928 = vunpack.c.l.b16 %v786
      %v929 = vunpack.c.h.b16 %v786
      %v930 = vunpack.c.l.b16 %v787
      %v931 = vunpack.c.h.b16 %v787
      %v932 = vunpack.c.l.b16 %v788
      %v933 = vunpack.c.h.b16 %v788
      %v934 = vunpack.c.l.b16 %v789
      %v935 = vunpack.c.h.b16 %v789
      %v936 = vunpack.c.l.b16 %v790
      %v937 = vunpack.c.h.b16 %v790
      %v938 = vunpack.c.l.b16 %v791
      %v939 = vunpack.c.h.b16 %v791
      %v940 = vunpack.c.l.b16 %v792
      %v941 = vunpack.c.h.b16 %v792
      %v942 = vunpack.c.l.b16 %v793
      %v943 = vunpack.c.h.b16 %v793
      %v944 = vunpack.c.l.b16 %v794
      %v945 = vunpack.c.h.b16 %v794
      %v946 = vunpack.c.l.b16 %v795
      %v947 = vunpack.c.h.b16 %v795
      %v948 = vunpack.c.l.b16 %v796
      %v949 = vunpack.c.h.b16 %v796
      %v950 = vunpack.c.l.b16 %v797
      %v951 = vunpack.c.h.b16 %v797
      %v952 = vunpack.c.l.b16 %v798
      %v953 = vunpack.c.h.b16 %v798
      %v954 = vunpack.c.l.b16 %v799
      %v955 = vunpack.c.h.b16 %v799
      %v956 = vunpack.c.l.b16 %v800
      %v957 = vunpack.c.h.b16 %v800
      %v958 = vunpack.c.l.b16 %v801
      %v959 = vunpack.c.h.b16 %v801
      %v960 = vunpack.c.l.b16 %v802
      %v961 = vunpack.c.h.b16 %v802
      %v962 = vunpack.c.l.b16 %v803
      %v963 = vunpack.c.h.b16 %v803
      %v964 = vunpack.c.l.b16 %v804
      %v965 = vunpack.c.h.b16 %v804
      %v966 = vunpack.c.l.b16 %v805
      %v967 = vunpack.c.h.b16 %v805
      %v968 = vpack.c.b16 %v898, %v896
      %v969 = vpack.c.b16 %v899, %v897
      %v970 = vpack.c.b16 %v902, %v900
      %v971 = vpack.c.b16 %v903, %v901
      %v972 = vpack.c.b16 %v906, %v904
      %v973 = vpack.c.b16 %v907, %v905
      %v974 = vpack.c.b16 %v910, %v908
      %v975 = vpack.c.b16 %v911, %v909
      %v976 = vpack.c.b16 %v914, %v912
      %v977 = vpack.c.b16 %v915, %v913
      %v978 = vpack.c.b16 %v918, %v916
      %v979 = vpack.c.b16 %v919, %v917
      %v980 = vpack.c.b16 %v922, %v920
      %v981 = vpack.c.b16 %v923, %v921
      %v982 = vpack.c.b16 %v926, %v924
      %v983 = vpack.c.b16 %v927, %v925
      %v984 = vpack.c.b16 %v930, %v928
      %v985 = vpack.c.b16 %v931, %v929
      %v986 = vpack.c.b16 %v934, %v932
      %v987 = vpack.c.b16 %v935, %v933
      %v988 = vpack.c.b16 %v938, %v936
      %v989 = vpack.c.b16 %v939, %v937
      %v990 = vpack.c.b16 %v942, %v940
      %v991 = vpack.c.b16 %v943, %v941
      %v992 = vpack.c.b16 %v946, %v944
      %v993 = vpack.c.b16 %v947, %v945
      %v994 = vpack.c.b16 %v950, %v948
      %v995 = vpack.c.b16 %v951, %v949
      %v996 = vpack.c.b16 %v954, %v952
      %v997 = vpack.c.b16 %v955, %v953
      %v998 = vpack.c.b16 %v958, %v956
      %v999 = vpack.c.b16 %v959, %v957
      %v1000 = vpack.c.b16 %v962, %v960
      %v1001 = vpack.c.b16 %v963, %v961
      %v1002 = vpack.c.b16 %v966, %v964
      %v1003 = vpack.c.b16 %v967, %v965
      %vm1040 = vcmask 261120
      %v1042 = vsel %vm1040, %v852, 0
      %v1045 = vsel %vm1040, %v855, 0
      %1047 = vmatpush.bf16.msra.mxu0 %v982
      %1048 = vmatpush.bf16.msra.mxu0 %v980
      %1049 = vmatpush.bf16.msra.mxu0 %v978
      %1050 = vmatpush.bf16.msra.mxu0 %v976
      %1051 = vmatpush.bf16.msra.mxu0 %v974
      %1052 = vmatpush.bf16.msra.mxu0 %v972
      %1053 = vmatpush.bf16.msra.mxu0 %v970
      %1054 = vmatpush.bf16.msra.mxu0 %v968
      %1055 = vmatmul.bf16.gmra.mxu0 %v850
      %v1056 = vpop.f32.mrf.mxu0
      %v1057 = vadd.f32 %v813, %v1056
      %v1058 = vpop.f32.mrf.mxu0
      %v1059 = vadd.f32 %v818, %v1058
      %1060 = vmatmul.bf16.gmra.mxu0 %v853
      %v1061 = vpop.f32.mrf.mxu0
      %v1062 = vadd.f32 %v823, %v1061
      %v1063 = vpop.f32.mrf.mxu0
      %v1064 = vadd.f32 %v828, %v1063
      %1065 = vdwg.mxu0
      %1066 = vmatpush.bf16.msra.mxu0 %v998
      %1067 = vmatpush.bf16.msra.mxu0 %v996
      %1068 = vmatpush.bf16.msra.mxu0 %v994
      %1069 = vmatpush.bf16.msra.mxu0 %v992
      %1070 = vmatpush.bf16.msra.mxu0 %v990
      %1071 = vmatpush.bf16.msra.mxu0 %v988
      %1072 = vmatpush.bf16.msra.mxu0 %v986
      %1073 = vmatpush.bf16.msra.mxu0 %v984
      %1074 = vmatmul.bf16.gmra.mxu0 %v851
      %v1075 = vpop.f32.mrf.mxu0
      %v1076 = vadd.f32 %v1057, %v1075
      %v1077 = vpop.f32.mrf.mxu0
      %v1078 = vadd.f32 %v1059, %v1077
      %1079 = vmatmul.bf16.gmra.mxu0 %v854
      %v1080 = vpop.f32.mrf.mxu0
      %v1081 = vadd.f32 %v1062, %v1080
      %v1082 = vpop.f32.mrf.mxu0
      %v1083 = vadd.f32 %v1064, %v1082
      %1084 = vdwg.mxu0
      %1085 = vmatpush.bf16.msra.mxu0 0
      %1086 = vmatpush.bf16.msra.mxu0 0
      %1087 = vmatpush.bf16.msra.mxu0 0
      %1088 = vmatpush.bf16.msra.mxu0 0
      %1089 = vmatpush.bf16.msra.mxu0 0
      %1090 = vmatpush.bf16.msra.mxu0 0
      %1091 = vmatpush.bf16.msra.mxu0 %v1002
      %1092 = vmatpush.bf16.msra.mxu0 %v1000
      %1093 = vmatmul.bf16.gmra.mxu0 %v1042
      %v1094 = vpop.f32.mrf.mxu0
      %v1095 = vadd.f32 %v1076, %v1094
      %v1096 = vpop.f32.mrf.mxu0
      %v1097 = vadd.f32 %v1078, %v1096
      %1098 = vmatmul.bf16.gmra.mxu0 %v1045
      %v1099 = vpop.f32.mrf.mxu0
      %v1100 = vadd.f32 %v1081, %v1099
      %v1101 = vpop.f32.mrf.mxu0
      %v1102 = vadd.f32 %v1083, %v1101
      %1103 = vdwg.mxu0
      %1104 = vmatpush.bf16.msra.mxu0 %v983
      %1105 = vmatpush.bf16.msra.mxu0 %v981
      %1106 = vmatpush.bf16.msra.mxu0 %v979
      %1107 = vmatpush.bf16.msra.mxu0 %v977
      %1108 = vmatpush.bf16.msra.mxu0 %v975
      %1109 = vmatpush.bf16.msra.mxu0 %v973
      %1110 = vmatpush.bf16.msra.mxu0 %v971
      %1111 = vmatpush.bf16.msra.mxu0 %v969
      %1112 = vmatmul.bf16.gmra.mxu0 %v850
      %v1113 = vpop.f32.mrf.mxu0
      %v1114 = vadd.f32 %v813, %v1113
      %v1115 = vpop.f32.mrf.mxu0
      %v1116 = vadd.f32 %v818, %v1115
      %1117 = vmatmul.bf16.gmra.mxu0 %v853
      %v1118 = vpop.f32.mrf.mxu0
      %v1119 = vadd.f32 %v823, %v1118
      %v1120 = vpop.f32.mrf.mxu0
      %v1121 = vadd.f32 %v828, %v1120
      %1122 = vdwg.mxu0
      %1123 = vmatpush.bf16.msra.mxu0 %v999
      %1124 = vmatpush.bf16.msra.mxu0 %v997
      %1125 = vmatpush.bf16.msra.mxu0 %v995
      %1126 = vmatpush.bf16.msra.mxu0 %v993
      %1127 = vmatpush.bf16.msra.mxu0 %v991
      %1128 = vmatpush.bf16.msra.mxu0 %v989
      %1129 = vmatpush.bf16.msra.mxu0 %v987
      %1130 = vmatpush.bf16.msra.mxu0 %v985
      %1131 = vmatmul.bf16.gmra.mxu0 %v851
      %v1132 = vpop.f32.mrf.mxu0
      %v1133 = vadd.f32 %v1114, %v1132
      %v1134 = vpop.f32.mrf.mxu0
      %v1135 = vadd.f32 %v1116, %v1134
      %1136 = vmatmul.bf16.gmra.mxu0 %v854
      %v1137 = vpop.f32.mrf.mxu0
      %v1138 = vadd.f32 %v1119, %v1137
      %v1139 = vpop.f32.mrf.mxu0
      %v1140 = vadd.f32 %v1121, %v1139
      %1141 = vdwg.mxu0
      %1142 = vmatpush.bf16.msra.mxu0 0
      %1143 = vmatpush.bf16.msra.mxu0 0
      %1144 = vmatpush.bf16.msra.mxu0 0
      %1145 = vmatpush.bf16.msra.mxu0 0
      %1146 = vmatpush.bf16.msra.mxu0 0
      %1147 = vmatpush.bf16.msra.mxu0 0
      %1148 = vmatpush.bf16.msra.mxu0 %v1003
      %1149 = vmatpush.bf16.msra.mxu0 %v1001
      %1150 = vmatmul.bf16.gmra.mxu0 %v1042
      %v1151 = vpop.f32.mrf.mxu0
      %v1152 = vadd.f32 %v1133, %v1151
      %v1153 = vpop.f32.mrf.mxu0
      %v1154 = vadd.f32 %v1135, %v1153
      %1155 = vmatmul.bf16.gmra.mxu0 %v1045
      %v1156 = vpop.f32.mrf.mxu0
      %v1157 = vadd.f32 %v1138, %v1156
      %v1158 = vpop.f32.mrf.mxu0
      %v1159 = vadd.f32 %v1140, %v1158
      %1160 = vdwg.mxu0
      %v1161 = vmax.f32 %v1095, 0.0
      %v1162 = vmax.f32 %v1152, 0.0
      %v1163 = vmax.f32 %v1097, 0.0
      %v1164 = vmax.f32 %v1154, 0.0
      %v1165 = vmax.f32 %v1100, 0.0
      %v1166 = vmax.f32 %v1157, 0.0
      %v1167 = vmax.f32 %v1102, 0.0
      %v1168 = vmax.f32 %v1159, 0.0
      %1169 = vrot.lane.b32.xlu0 %v1161, 17
      %v1170 = vpop.permute.xlu0 %1169
      %1171 = vrot.lane.b32.xlu0 %v1163, 17
      %v1172 = vpop.permute.xlu0 %1171
      %1173 = vrot.lane.b32.xlu0 %v1165, 17
      %v1174 = vpop.permute.xlu0 %1173
      %1175 = vrot.lane.b32.xlu0 %v1167, 17
      %v1176 = vpop.permute.xlu0 %1175
      %1177 = vrot.lane.b32.xlu0 %v1162, 17
      %v1178 = vpop.permute.xlu0 %1177
      %1179 = vrot.lane.b32.xlu0 %v1164, 17
      %v1180 = vpop.permute.xlu0 %1179
      %1181 = vrot.lane.b32.xlu0 %v1166, 17
      %v1182 = vpop.permute.xlu0 %1181
      %1183 = vrot.lane.b32.xlu0 %v1168, 17
      %v1184 = vpop.permute.xlu0 %1183
      %v1185 = vsel %vm387, %v1170, %v1178
      %v1186 = vsel %vm387, %v1172, %v1180
      %v1187 = vsel %vm387, %v1174, %v1182
      %v1188 = vsel %vm387, %v1176, %v1184
      %v1189 = vsel %vm387, %v1178, %v1170
      %v1190 = vsel %vm387, %v1180, %v1172
      %v1191 = vsel %vm387, %v1182, %v1174
      %v1192 = vsel %vm387, %v1184, %v1176
      %v1193 = vld [vmem:[%s1] ss:$8 sm:$0x3]
      %v1195 = vperm.slane %v1193, 0
      %v1196 = vperm.slane %v1193, 1
      %v1199 = vmul.f32 %v1189, %v1195
      %v1200 = vmul.f32 %v1185, %v1196
      %v1201 = vmul.f32 %v1190, %v1195
      %v1202 = vmul.f32 %v1186, %v1196
      %v1203 = vmul.f32 %v1191, %v1195
      %v1204 = vmul.f32 %v1187, %v1196
      %v1205 = vmul.f32 %v1192, %v1195
      %v1206 = vmul.f32 %v1188, %v1196
      %v1207 = vpack.c.bf16 %v1200, %v1199
      %v1208 = vpack.c.bf16 %v1202, %v1201
      %v1209 = vpack.c.bf16 %v1204, %v1203
      %v1210 = vpack.c.bf16 %v1206, %v1205
      %1211 = vst [vmem:[#allocation2] sm:$0xff] %v1207
      %1212 = vst [vmem:[#allocation2 + $0x8] sm:$0xff] %v1208
      %1213 = vst [vmem:[#allocation2 + $0x10] sm:$0xff] %v1209
      %1214 = vst [vmem:[#allocation2 + $0x18] sm:$0xff] %v1210
      %1215 = vrot.lane.b32.xlu0 %v1161, 16
      %v1216 = vpop.permute.xlu0 %1215
      %1217 = vrot.lane.b32.xlu0 %v1163, 16
      %v1218 = vpop.permute.xlu0 %1217
      %1219 = vrot.lane.b32.xlu0 %v1165, 16
      %v1220 = vpop.permute.xlu0 %1219
      %1221 = vrot.lane.b32.xlu0 %v1167, 16
      %v1222 = vpop.permute.xlu0 %1221
      %1223 = vrot.lane.b32.xlu0 %v1162, 16
      %v1224 = vpop.permute.xlu0 %1223
      %1225 = vrot.lane.b32.xlu0 %v1164, 16
      %v1226 = vpop.permute.xlu0 %1225
      %1227 = vrot.lane.b32.xlu0 %v1166, 16
      %v1228 = vpop.permute.xlu0 %1227
      %1229 = vrot.lane.b32.xlu0 %v1168, 16
      %v1230 = vpop.permute.xlu0 %1229
      %v1231 = vsel %vm434, %v1216, %v1224
      %v1232 = vsel %vm434, %v1218, %v1226
      %v1233 = vsel %vm434, %v1220, %v1228
      %v1234 = vsel %vm434, %v1222, %v1230
      %v1235 = vsel %vm434, %v1224, %v1216
      %v1236 = vsel %vm434, %v1226, %v1218
      %v1237 = vsel %vm434, %v1228, %v1220
      %v1238 = vsel %vm434, %v1230, %v1222
      %v1239 = vld [vmem:[%s443] ss:$8 sm:$0x3]
      %v1241 = vperm.slane %v1239, 0
      %v1242 = vperm.slane %v1239, 1
      %v1245 = vmul.f32 %v1235, %v1241
      %v1246 = vmul.f32 %v1231, %v1242
      %v1247 = vmul.f32 %v1236, %v1241
      %v1248 = vmul.f32 %v1232, %v1242
      %v1249 = vmul.f32 %v1237, %v1241
      %v1250 = vmul.f32 %v1233, %v1242
      %v1251 = vmul.f32 %v1238, %v1241
      %v1252 = vmul.f32 %v1234, %v1242
      %v1253 = vpack.c.bf16 %v1246, %v1245
      %v1254 = vpack.c.bf16 %v1248, %v1247
      %v1255 = vpack.c.bf16 %v1250, %v1249
      %v1256 = vpack.c.bf16 %v1252, %v1251
      %1257 = vst [vmem:[#allocation2 + $0x20] sm:$0xff] %v1253
      %1258 = vst [vmem:[#allocation2 + $0x28] sm:$0xff] %v1254
      %1259 = vst [vmem:[#allocation2 + $0x30] sm:$0xff] %v1255
      %1260 = vst [vmem:[#allocation2 + $0x38] sm:$0xff] %v1256
      %1261 = vrot.lane.b32.xlu0 %v1161, 15
      %v1262 = vpop.permute.xlu0 %1261
      %1263 = vrot.lane.b32.xlu0 %v1163, 15
      %v1264 = vpop.permute.xlu0 %1263
      %1265 = vrot.lane.b32.xlu0 %v1165, 15
      %v1266 = vpop.permute.xlu0 %1265
      %1267 = vrot.lane.b32.xlu0 %v1167, 15
      %v1268 = vpop.permute.xlu0 %1267
      %1269 = vrot.lane.b32.xlu0 %v1162, 15
      %v1270 = vpop.permute.xlu0 %1269
      %1271 = vrot.lane.b32.xlu0 %v1164, 15
      %v1272 = vpop.permute.xlu0 %1271
      %1273 = vrot.lane.b32.xlu0 %v1166, 15
      %v1274 = vpop.permute.xlu0 %1273
      %1275 = vrot.lane.b32.xlu0 %v1168, 15
      %v1276 = vpop.permute.xlu0 %1275
      %v1277 = vsel %vm482, %v1262, %v1270
      %v1278 = vsel %vm482, %v1264, %v1272
      %v1279 = vsel %vm482, %v1266, %v1274
      %v1280 = vsel %vm482, %v1268, %v1276
      %v1281 = vsel %vm482, %v1270, %v1262
      %v1282 = vsel %vm482, %v1272, %v1264
      %v1283 = vsel %vm482, %v1274, %v1266
      %v1284 = vsel %vm482, %v1276, %v1268
      %v1285 = vld [vmem:[%s491] ss:$8 sm:$0x3]
      %v1287 = vperm.slane %v1285, 0
      %v1288 = vperm.slane %v1285, 1
      %v1291 = vmul.f32 %v1281, %v1287
      %v1292 = vmul.f32 %v1277, %v1288
      %v1293 = vmul.f32 %v1282, %v1287
      %v1294 = vmul.f32 %v1278, %v1288
      %v1295 = vmul.f32 %v1283, %v1287
      %v1296 = vmul.f32 %v1279, %v1288
      %v1297 = vmul.f32 %v1284, %v1287
      %v1298 = vmul.f32 %v1280, %v1288
      %v1299 = vpack.c.bf16 %v1292, %v1291
      %v1300 = vpack.c.bf16 %v1294, %v1293
      %v1301 = vpack.c.bf16 %v1296, %v1295
      %v1302 = vpack.c.bf16 %v1298, %v1297
      %1303 = vst [vmem:[#allocation2 + $0x40] sm:$0xff] %v1299
      %1304 = vst [vmem:[#allocation2 + $0x48] sm:$0xff] %v1300
      %1305 = vst [vmem:[#allocation2 + $0x50] sm:$0xff] %v1301
      %1306 = vst [vmem:[#allocation2 + $0x58] sm:$0xff] %v1302
      %1307 = vrot.lane.b32.xlu0 %v1161, 1
      %v1308 = vpop.permute.xlu0 %1307
      %1309 = vrot.lane.b32.xlu0 %v1163, 1
      %v1310 = vpop.permute.xlu0 %1309
      %1311 = vrot.lane.b32.xlu0 %v1165, 1
      %v1312 = vpop.permute.xlu0 %1311
      %1313 = vrot.lane.b32.xlu0 %v1167, 1
      %v1314 = vpop.permute.xlu0 %1313
      %1315 = vrot.lane.b32.xlu0 %v1162, 1
      %v1316 = vpop.permute.xlu0 %1315
      %1317 = vrot.lane.b32.xlu0 %v1164, 1
      %v1318 = vpop.permute.xlu0 %1317
      %1319 = vrot.lane.b32.xlu0 %v1166, 1
      %v1320 = vpop.permute.xlu0 %1319
      %1321 = vrot.lane.b32.xlu0 %v1168, 1
      %v1322 = vpop.permute.xlu0 %1321
      %v1323 = vsel %vm530, %v1308, %v1316
      %v1324 = vsel %vm530, %v1310, %v1318
      %v1325 = vsel %vm530, %v1312, %v1320
      %v1326 = vsel %vm530, %v1314, %v1322
      %v1327 = vsel %vm530, %v1316, %v1308
      %v1328 = vsel %vm530, %v1318, %v1310
      %v1329 = vsel %vm530, %v1320, %v1312
      %v1330 = vsel %vm530, %v1322, %v1314
      %v1331 = vld [vmem:[%s539] ss:$8 sm:$0x3]
      %v1333 = vperm.slane %v1331, 0
      %v1334 = vperm.slane %v1331, 1
      %v1337 = vmul.f32 %v1327, %v1333
      %v1338 = vmul.f32 %v1323, %v1334
      %v1339 = vmul.f32 %v1328, %v1333
      %v1340 = vmul.f32 %v1324, %v1334
      %v1341 = vmul.f32 %v1329, %v1333
      %v1342 = vmul.f32 %v1325, %v1334
      %v1343 = vmul.f32 %v1330, %v1333
      %v1344 = vmul.f32 %v1326, %v1334
      %v1345 = vpack.c.bf16 %v1338, %v1337
      %v1346 = vpack.c.bf16 %v1340, %v1339
      %v1347 = vpack.c.bf16 %v1342, %v1341
      %v1348 = vpack.c.bf16 %v1344, %v1343
      %1349 = vst [vmem:[#allocation2 + $0x60] sm:$0xff] %v1345
      %1350 = vst [vmem:[#allocation2 + $0x68] sm:$0xff] %v1346
      %1351 = vst [vmem:[#allocation2 + $0x70] sm:$0xff] %v1347
      %1352 = vst [vmem:[#allocation2 + $0x78] sm:$0xff] %v1348
      %v1353 = vpack.c.bf16 %v1162, %v1161
      %v1354 = vpack.c.bf16 %v1164, %v1163
      %v1355 = vpack.c.bf16 %v1166, %v1165
      %v1356 = vpack.c.bf16 %v1168, %v1167
      %1357 = vst [vmem:[#allocation2 + $0x80] sm:$0xff] %v1353
      %1358 = vst [vmem:[#allocation2 + $0x88] sm:$0xff] %v1354
      %1359 = vst [vmem:[#allocation2 + $0x90] sm:$0xff] %v1355
      %1360 = vst [vmem:[#allocation2 + $0x98] sm:$0xff] %v1356
      %1361 = vrot.lane.b32.xlu0 %v1161, 127
      %v1362 = vpop.permute.xlu0 %1361
      %1363 = vrot.lane.b32.xlu0 %v1163, 127
      %v1364 = vpop.permute.xlu0 %1363
      %1365 = vrot.lane.b32.xlu0 %v1165, 127
      %v1366 = vpop.permute.xlu0 %1365
      %1367 = vrot.lane.b32.xlu0 %v1167, 127
      %v1368 = vpop.permute.xlu0 %1367
      %1369 = vrot.lane.b32.xlu0 %v1162, 127
      %v1370 = vpop.permute.xlu0 %1369
      %1371 = vrot.lane.b32.xlu0 %v1164, 127
      %v1372 = vpop.permute.xlu0 %1371
      %1373 = vrot.lane.b32.xlu0 %v1166, 127
      %v1374 = vpop.permute.xlu0 %1373
      %1375 = vrot.lane.b32.xlu0 %v1168, 127
      %v1376 = vpop.permute.xlu0 %1375
      %v1377 = vsel %vm586, %v1362, %v1370
      %v1378 = vsel %vm586, %v1364, %v1372
      %v1379 = vsel %vm586, %v1366, %v1374
      %v1380 = vsel %vm586, %v1368, %v1376
      %v1381 = vsel %vm586, %v1370, %v1362
      %v1382 = vsel %vm586, %v1372, %v1364
      %v1383 = vsel %vm586, %v1374, %v1366
      %v1384 = vsel %vm586, %v1376, %v1368
      %v1385 = vld [vmem:[%s595] ss:$8 sm:$0x3]
      %v1387 = vperm.slane %v1385, 0
      %v1388 = vperm.slane %v1385, 1
      %v1391 = vmul.f32 %v1377, %v1387
      %v1392 = vmul.f32 %v1381, %v1388
      %v1393 = vmul.f32 %v1378, %v1387
      %v1394 = vmul.f32 %v1382, %v1388
      %v1395 = vmul.f32 %v1379, %v1387
      %v1396 = vmul.f32 %v1383, %v1388
      %v1397 = vmul.f32 %v1380, %v1387
      %v1398 = vmul.f32 %v1384, %v1388
      %v1399 = vpack.c.bf16 %v1392, %v1391
      %v1400 = vpack.c.bf16 %v1394, %v1393
      %v1401 = vpack.c.bf16 %v1396, %v1395
      %v1402 = vpack.c.bf16 %v1398, %v1397
      %1403 = vst [vmem:[#allocation2 + $0xa0] sm:$0xff] %v1399
      %1404 = vst [vmem:[#allocation2 + $0xa8] sm:$0xff] %v1400
      %1405 = vst [vmem:[#allocation2 + $0xb0] sm:$0xff] %v1401
      %1406 = vst [vmem:[#allocation2 + $0xb8] sm:$0xff] %v1402
      %1407 = vrot.lane.b32.xlu0 %v1161, 113
      %v1408 = vpop.permute.xlu0 %1407
      %1409 = vrot.lane.b32.xlu0 %v1163, 113
      %v1410 = vpop.permute.xlu0 %1409
      %1411 = vrot.lane.b32.xlu0 %v1165, 113
      %v1412 = vpop.permute.xlu0 %1411
      %1413 = vrot.lane.b32.xlu0 %v1167, 113
      %v1414 = vpop.permute.xlu0 %1413
      %1415 = vrot.lane.b32.xlu0 %v1162, 113
      %v1416 = vpop.permute.xlu0 %1415
      %1417 = vrot.lane.b32.xlu0 %v1164, 113
      %v1418 = vpop.permute.xlu0 %1417
      %1419 = vrot.lane.b32.xlu0 %v1166, 113
      %v1420 = vpop.permute.xlu0 %1419
      %1421 = vrot.lane.b32.xlu0 %v1168, 113
      %v1422 = vpop.permute.xlu0 %1421
      %v1423 = vsel %vm634, %v1408, %v1416
      %v1424 = vsel %vm634, %v1410, %v1418
      %v1425 = vsel %vm634, %v1412, %v1420
      %v1426 = vsel %vm634, %v1414, %v1422
      %v1427 = vsel %vm634, %v1416, %v1408
      %v1428 = vsel %vm634, %v1418, %v1410
      %v1429 = vsel %vm634, %v1420, %v1412
      %v1430 = vsel %vm634, %v1422, %v1414
      %v1431 = vld [vmem:[%s643] ss:$8 sm:$0x3]
      %v1433 = vperm.slane %v1431, 0
      %v1434 = vperm.slane %v1431, 1
      %v1437 = vmul.f32 %v1423, %v1433
      %v1438 = vmul.f32 %v1427, %v1434
      %v1439 = vmul.f32 %v1424, %v1433
      %v1440 = vmul.f32 %v1428, %v1434
      %v1441 = vmul.f32 %v1425, %v1433
      %v1442 = vmul.f32 %v1429, %v1434
      %v1443 = vmul.f32 %v1426, %v1433
      %v1444 = vmul.f32 %v1430, %v1434
      %v1445 = vpack.c.bf16 %v1438, %v1437
      %v1446 = vpack.c.bf16 %v1440, %v1439
      %v1447 = vpack.c.bf16 %v1442, %v1441
      %v1448 = vpack.c.bf16 %v1444, %v1443
      %1449 = vst [vmem:[#allocation2 + $0xc0] sm:$0xff] %v1445
      %1450 = vst [vmem:[#allocation2 + $0xc8] sm:$0xff] %v1446
      %1451 = vst [vmem:[#allocation2 + $0xd0] sm:$0xff] %v1447
      %1452 = vst [vmem:[#allocation2 + $0xd8] sm:$0xff] %v1448
      %1453 = vrot.lane.b32.xlu0 %v1161, 112
      %v1454 = vpop.permute.xlu0 %1453
      %1455 = vrot.lane.b32.xlu0 %v1163, 112
      %v1456 = vpop.permute.xlu0 %1455
      %1457 = vrot.lane.b32.xlu0 %v1165, 112
      %v1458 = vpop.permute.xlu0 %1457
      %1459 = vrot.lane.b32.xlu0 %v1167, 112
      %v1460 = vpop.permute.xlu0 %1459
      %1461 = vrot.lane.b32.xlu0 %v1162, 112
      %v1462 = vpop.permute.xlu0 %1461
      %1463 = vrot.lane.b32.xlu0 %v1164, 112
      %v1464 = vpop.permute.xlu0 %1463
      %1465 = vrot.lane.b32.xlu0 %v1166, 112
      %v1466 = vpop.permute.xlu0 %1465
      %1467 = vrot.lane.b32.xlu0 %v1168, 112
      %v1468 = vpop.permute.xlu0 %1467
      %v1469 = vsel %vm682, %v1454, %v1462
      %v1470 = vsel %vm682, %v1456, %v1464
      %v1471 = vsel %vm682, %v1458, %v1466
      %v1472 = vsel %vm682, %v1460, %v1468
      %v1473 = vsel %vm682, %v1462, %v1454
      %v1474 = vsel %vm682, %v1464, %v1456
      %v1475 = vsel %vm682, %v1466, %v1458
      %v1476 = vsel %vm682, %v1468, %v1460
      %v1477 = vld [vmem:[%s691] ss:$8 sm:$0x3]
      %v1479 = vperm.slane %v1477, 0
      %v1480 = vperm.slane %v1477, 1
      %v1483 = vmul.f32 %v1469, %v1479
      %v1484 = vmul.f32 %v1473, %v1480
      %v1485 = vmul.f32 %v1470, %v1479
      %v1486 = vmul.f32 %v1474, %v1480
      %v1487 = vmul.f32 %v1471, %v1479
      %v1488 = vmul.f32 %v1475, %v1480
      %v1489 = vmul.f32 %v1472, %v1479
      %v1490 = vmul.f32 %v1476, %v1480
      %v1491 = vpack.c.bf16 %v1484, %v1483
      %v1492 = vpack.c.bf16 %v1486, %v1485
      %v1493 = vpack.c.bf16 %v1488, %v1487
      %v1494 = vpack.c.bf16 %v1490, %v1489
      %1495 = vst [vmem:[#allocation2 + $0xe0] sm:$0xff] %v1491
      %1496 = vst [vmem:[#allocation2 + $0xe8] sm:$0xff] %v1492
      %1497 = vst [vmem:[#allocation2 + $0xf0] sm:$0xff] %v1493
      %1498 = vst [vmem:[#allocation2 + $0xf8] sm:$0xff] %v1494
      %1499 = vrot.lane.b32.xlu0 %v1161, 111
      %v1500 = vpop.permute.xlu0 %1499
      %1501 = vrot.lane.b32.xlu0 %v1163, 111
      %v1502 = vpop.permute.xlu0 %1501
      %1503 = vrot.lane.b32.xlu0 %v1165, 111
      %v1504 = vpop.permute.xlu0 %1503
      %1505 = vrot.lane.b32.xlu0 %v1167, 111
      %v1506 = vpop.permute.xlu0 %1505
      %1507 = vrot.lane.b32.xlu0 %v1162, 111
      %v1508 = vpop.permute.xlu0 %1507
      %1509 = vrot.lane.b32.xlu0 %v1164, 111
      %v1510 = vpop.permute.xlu0 %1509
      %1511 = vrot.lane.b32.xlu0 %v1166, 111
      %v1512 = vpop.permute.xlu0 %1511
      %1513 = vrot.lane.b32.xlu0 %v1168, 111
      %v1514 = vpop.permute.xlu0 %1513
      %v1515 = vsel %vm730, %v1500, %v1508
      %v1516 = vsel %vm730, %v1502, %v1510
      %v1517 = vsel %vm730, %v1504, %v1512
      %v1518 = vsel %vm730, %v1506, %v1514
      %v1519 = vsel %vm730, %v1508, %v1500
      %v1520 = vsel %vm730, %v1510, %v1502
      %v1521 = vsel %vm730, %v1512, %v1504
      %v1522 = vsel %vm730, %v1514, %v1506
      %v1523 = vld [vmem:[%s739] ss:$8 sm:$0x3]
      %v1525 = vperm.slane %v1523, 0
      %v1526 = vperm.slane %v1523, 1
      %v1529 = vmul.f32 %v1515, %v1525
      %v1530 = vmul.f32 %v1519, %v1526
      %v1531 = vmul.f32 %v1516, %v1525
      %v1532 = vmul.f32 %v1520, %v1526
      %v1533 = vmul.f32 %v1517, %v1525
      %v1534 = vmul.f32 %v1521, %v1526
      %v1535 = vmul.f32 %v1518, %v1525
      %v1536 = vmul.f32 %v1522, %v1526
      %v1537 = vpack.c.bf16 %v1530, %v1529
      %v1538 = vpack.c.bf16 %v1532, %v1531
      %v1539 = vpack.c.bf16 %v1534, %v1533
      %v1540 = vpack.c.bf16 %v1536, %v1535
      %1541 = vst [vmem:[#allocation2 + $0x100] sm:$0xff] %v1537
      %1542 = vst [vmem:[#allocation2 + $0x108] sm:$0xff] %v1538
      %1543 = vst [vmem:[#allocation2 + $0x110] sm:$0xff] %v1539
      %1544 = vst [vmem:[#allocation2 + $0x118] sm:$0xff] %v1540
      %v1545 = vld [vmem:[%s4] sm:$0xff]
      %v1546 = vld [vmem:[%s4 + $0x8] sm:$0xf]
      %v1547 = vld [vmem:[%s4 + $0xc] sm:$0xff]
      %v1548 = vld [vmem:[%s4 + $0x14] sm:$0xf]
      %v1549 = vld [vmem:[%s4 + $0x18] sm:$0xff]
      %v1550 = vld [vmem:[%s4 + $0x20] sm:$0xf]
      %v1551 = vld [vmem:[%s4 + $0x24] sm:$0xff]
      %v1552 = vld [vmem:[%s4 + $0x2c] sm:$0xf]
      %v1553 = vld [vmem:[#allocation2] sm:$0xff]
      %v1554 = vld [vmem:[#allocation2 + $0x8] sm:$0xff]
      %v1555 = vld [vmem:[#allocation2 + $0x10] sm:$0xff]
      %v1556 = vld [vmem:[#allocation2 + $0x18] sm:$0xff]
      %v1557 = vld [vmem:[#allocation2 + $0x20] sm:$0xff]
      %v1558 = vld [vmem:[#allocation2 + $0x28] sm:$0xff]
      %v1559 = vld [vmem:[#allocation2 + $0x30] sm:$0xff]
      %v1560 = vld [vmem:[#allocation2 + $0x38] sm:$0xff]
      %v1561 = vld [vmem:[#allocation2 + $0x40] sm:$0xff]
      %v1562 = vld [vmem:[#allocation2 + $0x48] sm:$0xff]
      %v1563 = vld [vmem:[#allocation2 + $0x50] sm:$0xff]
      %v1564 = vld [vmem:[#allocation2 + $0x58] sm:$0xff]
      %v1565 = vld [vmem:[#allocation2 + $0x60] sm:$0xff]
      %v1566 = vld [vmem:[#allocation2 + $0x68] sm:$0xff]
      %v1567 = vld [vmem:[#allocation2 + $0x70] sm:$0xff]
      %v1568 = vld [vmem:[#allocation2 + $0x78] sm:$0xff]
      %v1569 = vld [vmem:[#allocation2 + $0x80] sm:$0xff]
      %v1570 = vld [vmem:[#allocation2 + $0x88] sm:$0xff]
      %v1571 = vld [vmem:[#allocation2 + $0x90] sm:$0xff]
      %v1572 = vld [vmem:[#allocation2 + $0x98] sm:$0xff]
      %v1573 = vld [vmem:[#allocation2 + $0xa0] sm:$0xff]
      %v1574 = vld [vmem:[#allocation2 + $0xa8] sm:$0xff]
      %v1575 = vld [vmem:[#allocation2 + $0xb0] sm:$0xff]
      %v1576 = vld [vmem:[#allocation2 + $0xb8] sm:$0xff]
      %v1577 = vld [vmem:[#allocation2 + $0xc0] sm:$0xff]
      %v1578 = vld [vmem:[#allocation2 + $0xc8] sm:$0xff]
      %v1579 = vld [vmem:[#allocation2 + $0xd0] sm:$0xff]
      %v1580 = vld [vmem:[#allocation2 + $0xd8] sm:$0xff]
      %v1581 = vld [vmem:[#allocation2 + $0xe0] sm:$0xff]
      %v1582 = vld [vmem:[#allocation2 + $0xe8] sm:$0xff]
      %v1583 = vld [vmem:[#allocation2 + $0xf0] sm:$0xff]
      %v1584 = vld [vmem:[#allocation2 + $0xf8] sm:$0xff]
      %v1585 = vld [vmem:[#allocation2 + $0x100] sm:$0xff]
      %v1586 = vld [vmem:[#allocation2 + $0x108] sm:$0xff]
      %v1587 = vld [vmem:[#allocation2 + $0x110] sm:$0xff]
      %v1588 = vld [vmem:[#allocation2 + $0x118] sm:$0xff]
      %v1589 = vld [vmem:[%s5] sm:$0xff]
      %v1590 = vld [vmem:[%s5 + $0x8] sm:$0xff]
      %v1591 = vld [vmem:[%s5 + $0x10] sm:$0xff]
      %v1592 = vld [vmem:[%s5 + $0x18] sm:$0xff]
      %1594 = vset.pattern.permute.xlu0 0
      %1595 = vperm.xlu0 %1594, %v1589
      %v1596 = vpop.permute.xlu0 %1595
      %1599 = vset.pattern.permute.xlu0 0
      %1600 = vperm.xlu0 %1599, %v1590
      %v1601 = vpop.permute.xlu0 %1600
      %1604 = vset.pattern.permute.xlu0 0
      %1605 = vperm.xlu0 %1604, %v1591
      %v1606 = vpop.permute.xlu0 %1605
      %1609 = vset.pattern.permute.xlu0 0
      %1610 = vperm.xlu0 %1609, %v1592
      %v1611 = vpop.permute.xlu0 %1610
      %v1621 = vunpack.c.l.b16 %v1545
      %v1622 = vunpack.c.h.b16 %v1545
      %v1623 = vunpack.c.l.b16 %v1546
      %v1624 = vunpack.c.l.b16 %v1547
      %v1625 = vunpack.c.h.b16 %v1547
      %v1626 = vunpack.c.l.b16 %v1548
      %v1627 = vunpack.c.l.b16 %v1549
      %v1628 = vunpack.c.h.b16 %v1549
      %v1629 = vunpack.c.l.b16 %v1550
      %v1630 = vunpack.c.l.b16 %v1551
      %v1631 = vunpack.c.h.b16 %v1551
      %v1632 = vunpack.c.l.b16 %v1552
      %v1633 = vpack.c.b16 %v1624, %v1621
      %v1634 = vpack.c.b16 %v1625, %v1622
      %v1635 = vpack.c.b16 %v1626, %v1623
      %v1636 = vpack.c.b16 %v1630, %v1627
      %v1637 = vpack.c.b16 %v1631, %v1628
      %v1638 = vpack.c.b16 %v1632, %v1629
      %v1679 = vunpack.c.l.b16 %v1553
      %v1680 = vunpack.c.h.b16 %v1553
      %v1681 = vunpack.c.l.b16 %v1554
      %v1682 = vunpack.c.h.b16 %v1554
      %v1683 = vunpack.c.l.b16 %v1555
      %v1684 = vunpack.c.h.b16 %v1555
      %v1685 = vunpack.c.l.b16 %v1556
      %v1686 = vunpack.c.h.b16 %v1556
      %v1687 = vunpack.c.l.b16 %v1557
      %v1688 = vunpack.c.h.b16 %v1557
      %v1689 = vunpack.c.l.b16 %v1558
      %v1690 = vunpack.c.h.b16 %v1558
      %v1691 = vunpack.c.l.b16 %v1559
      %v1692 = vunpack.c.h.b16 %v1559
      %v1693 = vunpack.c.l.b16 %v1560
      %v1694 = vunpack.c.h.b16 %v1560
      %v1695 = vunpack.c.l.b16 %v1561
      %v1696 = vunpack.c.h.b16 %v1561
      %v1697 = vunpack.c.l.b16 %v1562
      %v1698 = vunpack.c.h.b16 %v1562
      %v1699 = vunpack.c.l.b16 %v1563
      %v1700 = vunpack.c.h.b16 %v1563
      %v1701 = vunpack.c.l.b16 %v1564
      %v1702 = vunpack.c.h.b16 %v1564
      %v1703 = vunpack.c.l.b16 %v1565
      %v1704 = vunpack.c.h.b16 %v1565
      %v1705 = vunpack.c.l.b16 %v1566
      %v1706 = vunpack.c.h.b16 %v1566
      %v1707 = vunpack.c.l.b16 %v1567
      %v1708 = vunpack.c.h.b16 %v1567
      %v1709 = vunpack.c.l.b16 %v1568
      %v1710 = vunpack.c.h.b16 %v1568
      %v1711 = vunpack.c.l.b16 %v1569
      %v1712 = vunpack.c.h.b16 %v1569
      %v1713 = vunpack.c.l.b16 %v1570
      %v1714 = vunpack.c.h.b16 %v1570
      %v1715 = vunpack.c.l.b16 %v1571
      %v1716 = vunpack.c.h.b16 %v1571
      %v1717 = vunpack.c.l.b16 %v1572
      %v1718 = vunpack.c.h.b16 %v1572
      %v1719 = vunpack.c.l.b16 %v1573
      %v1720 = vunpack.c.h.b16 %v1573
      %v1721 = vunpack.c.l.b16 %v1574
      %v1722 = vunpack.c.h.b16 %v1574
      %v1723 = vunpack.c.l.b16 %v1575
      %v1724 = vunpack.c.h.b16 %v1575
      %v1725 = vunpack.c.l.b16 %v1576
      %v1726 = vunpack.c.h.b16 %v1576
      %v1727 = vunpack.c.l.b16 %v1577
      %v1728 = vunpack.c.h.b16 %v1577
      %v1729 = vunpack.c.l.b16 %v1578
      %v1730 = vunpack.c.h.b16 %v1578
      %v1731 = vunpack.c.l.b16 %v1579
      %v1732 = vunpack.c.h.b16 %v1579
      %v1733 = vunpack.c.l.b16 %v1580
      %v1734 = vunpack.c.h.b16 %v1580
      %v1735 = vunpack.c.l.b16 %v1581
      %v1736 = vunpack.c.h.b16 %v1581
      %v1737 = vunpack.c.l.b16 %v1582
      %v1738 = vunpack.c.h.b16 %v1582
      %v1739 = vunpack.c.l.b16 %v1583
      %v1740 = vunpack.c.h.b16 %v1583
      %v1741 = vunpack.c.l.b16 %v1584
      %v1742 = vunpack.c.h.b16 %v1584
      %v1743 = vunpack.c.l.b16 %v1585
      %v1744 = vunpack.c.h.b16 %v1585
      %v1745 = vunpack.c.l.b16 %v1586
      %v1746 = vunpack.c.h.b16 %v1586
      %v1747 = vunpack.c.l.b16 %v1587
      %v1748 = vunpack.c.h.b16 %v1587
      %v1749 = vunpack.c.l.b16 %v1588
      %v1750 = vunpack.c.h.b16 %v1588
      %v1751 = vpack.c.b16 %v1681, %v1679
      %v1752 = vpack.c.b16 %v1682, %v1680
      %v1753 = vpack.c.b16 %v1685, %v1683
      %v1754 = vpack.c.b16 %v1686, %v1684
      %v1755 = vpack.c.b16 %v1689, %v1687
      %v1756 = vpack.c.b16 %v1690, %v1688
      %v1757 = vpack.c.b16 %v1693, %v1691
      %v1758 = vpack.c.b16 %v1694, %v1692
      %v1759 = vpack.c.b16 %v1697, %v1695
      %v1760 = vpack.c.b16 %v1698, %v1696
      %v1761 = vpack.c.b16 %v1701, %v1699
      %v1762 = vpack.c.b16 %v1702, %v1700
      %v1763 = vpack.c.b16 %v1705, %v1703
      %v1764 = vpack.c.b16 %v1706, %v1704
      %v1765 = vpack.c.b16 %v1709, %v1707
      %v1766 = vpack.c.b16 %v1710, %v1708
      %v1767 = vpack.c.b16 %v1713, %v1711
      %v1768 = vpack.c.b16 %v1714, %v1712
      %v1769 = vpack.c.b16 %v1717, %v1715
      %v1770 = vpack.c.b16 %v1718, %v1716
      %v1771 = vpack.c.b16 %v1721, %v1719
      %v1772 = vpack.c.b16 %v1722, %v1720
      %v1773 = vpack.c.b16 %v1725, %v1723
      %v1774 = vpack.c.b16 %v1726, %v1724
      %v1775 = vpack.c.b16 %v1729, %v1727
      %v1776 = vpack.c.b16 %v1730, %v1728
      %v1777 = vpack.c.b16 %v1733, %v1731
      %v1778 = vpack.c.b16 %v1734, %v1732
      %v1779 = vpack.c.b16 %v1737, %v1735
      %v1780 = vpack.c.b16 %v1738, %v1736
      %v1781 = vpack.c.b16 %v1741, %v1739
      %v1782 = vpack.c.b16 %v1742, %v1740
      %v1783 = vpack.c.b16 %v1745, %v1743
      %v1784 = vpack.c.b16 %v1746, %v1744
      %v1785 = vpack.c.b16 %v1749, %v1747
      %v1786 = vpack.c.b16 %v1750, %v1748
      %v1824 = vsel %vm1040, %v1635, 0
      %v1827 = vsel %vm1040, %v1638, 0
      %1829 = vmatpush.bf16.msra.mxu0 %v1765
      %1830 = vmatpush.bf16.msra.mxu0 %v1763
      %1831 = vmatpush.bf16.msra.mxu0 %v1761
      %1832 = vmatpush.bf16.msra.mxu0 %v1759
      %1833 = vmatpush.bf16.msra.mxu0 %v1757
      %1834 = vmatpush.bf16.msra.mxu0 %v1755
      %1835 = vmatpush.bf16.msra.mxu0 %v1753
      %1836 = vmatpush.bf16.msra.mxu0 %v1751
      %1837 = vmatmul.bf16.gmra.mxu0 %v1633
      %v1838 = vpop.f32.mrf.mxu0
      %v1839 = vadd.f32 %v1596, %v1838
      %v1840 = vpop.f32.mrf.mxu0
      %v1841 = vadd.f32 %v1601, %v1840
      %1842 = vmatmul.bf16.gmra.mxu0 %v1636
      %v1843 = vpop.f32.mrf.mxu0
      %v1844 = vadd.f32 %v1606, %v1843
      %v1845 = vpop.f32.mrf.mxu0
      %v1846 = vadd.f32 %v1611, %v1845
      %1847 = vdwg.mxu0
      %1848 = vmatpush.bf16.msra.mxu0 %v1781
      %1849 = vmatpush.bf16.msra.mxu0 %v1779
      %1850 = vmatpush.bf16.msra.mxu0 %v1777
      %1851 = vmatpush.bf16.msra.mxu0 %v1775
      %1852 = vmatpush.bf16.msra.mxu0 %v1773
      %1853 = vmatpush.bf16.msra.mxu0 %v1771
      %1854 = vmatpush.bf16.msra.mxu0 %v1769
      %1855 = vmatpush.bf16.msra.mxu0 %v1767
      %1856 = vmatmul.bf16.gmra.mxu0 %v1634
      %v1857 = vpop.f32.mrf.mxu0
      %v1858 = vadd.f32 %v1839, %v1857
      %v1859 = vpop.f32.mrf.mxu0
      %v1860 = vadd.f32 %v1841, %v1859
      %1861 = vmatmul.bf16.gmra.mxu0 %v1637
      %v1862 = vpop.f32.mrf.mxu0
      %v1863 = vadd.f32 %v1844, %v1862
      %v1864 = vpop.f32.mrf.mxu0
      %v1865 = vadd.f32 %v1846, %v1864
      %1866 = vdwg.mxu0
      %1867 = vmatpush.bf16.msra.mxu0 0
      %1868 = vmatpush.bf16.msra.mxu0 0
      %1869 = vmatpush.bf16.msra.mxu0 0
      %1870 = vmatpush.bf16.msra.mxu0 0
      %1871 = vmatpush.bf16.msra.mxu0 0
      %1872 = vmatpush.bf16.msra.mxu0 0
      %1873 = vmatpush.bf16.msra.mxu0 %v1785
      %1874 = vmatpush.bf16.msra.mxu0 %v1783
      %1875 = vmatmul.bf16.gmra.mxu0 %v1824
      %v1876 = vpop.f32.mrf.mxu0
      %v1877 = vadd.f32 %v1858, %v1876
      %v1878 = vpop.f32.mrf.mxu0
      %v1879 = vadd.f32 %v1860, %v1878
      %1880 = vmatmul.bf16.gmra.mxu0 %v1827
      %v1881 = vpop.f32.mrf.mxu0
      %v1882 = vadd.f32 %v1863, %v1881
      %v1883 = vpop.f32.mrf.mxu0
      %v1884 = vadd.f32 %v1865, %v1883
      %1885 = vdwg.mxu0
      %1886 = vmatpush.bf16.msra.mxu0 %v1766
      %1887 = vmatpush.bf16.msra.mxu0 %v1764
      %1888 = vmatpush.bf16.msra.mxu0 %v1762
      %1889 = vmatpush.bf16.msra.mxu0 %v1760
      %1890 = vmatpush.bf16.msra.mxu0 %v1758
      %1891 = vmatpush.bf16.msra.mxu0 %v1756
      %1892 = vmatpush.bf16.msra.mxu0 %v1754
      %1893 = vmatpush.bf16.msra.mxu0 %v1752
      %1894 = vmatmul.bf16.gmra.mxu0 %v1633
      %v1895 = vpop.f32.mrf.mxu0
      %v1896 = vadd.f32 %v1596, %v1895
      %v1897 = vpop.f32.mrf.mxu0
      %v1898 = vadd.f32 %v1601, %v1897
      %1899 = vmatmul.bf16.gmra.mxu0 %v1636
      %v1900 = vpop.f32.mrf.mxu0
      %v1901 = vadd.f32 %v1606, %v1900
      %v1902 = vpop.f32.mrf.mxu0
      %v1903 = vadd.f32 %v1611, %v1902
      %1904 = vdwg.mxu0
      %1905 = vmatpush.bf16.msra.mxu0 %v1782
      %1906 = vmatpush.bf16.msra.mxu0 %v1780
      %1907 = vmatpush.bf16.msra.mxu0 %v1778
      %1908 = vmatpush.bf16.msra.mxu0 %v1776
      %1909 = vmatpush.bf16.msra.mxu0 %v1774
      %1910 = vmatpush.bf16.msra.mxu0 %v1772
      %1911 = vmatpush.bf16.msra.mxu0 %v1770
      %1912 = vmatpush.bf16.msra.mxu0 %v1768
      %1913 = vmatmul.bf16.gmra.mxu0 %v1634
      %v1914 = vpop.f32.mrf.mxu0
      %v1915 = vadd.f32 %v1896, %v1914
      %v1916 = vpop.f32.mrf.mxu0
      %v1917 = vadd.f32 %v1898, %v1916
      %1918 = vmatmul.bf16.gmra.mxu0 %v1637
      %v1919 = vpop.f32.mrf.mxu0
      %v1920 = vadd.f32 %v1901, %v1919
      %v1921 = vpop.f32.mrf.mxu0
      %v1922 = vadd.f32 %v1903, %v1921
      %1923 = vdwg.mxu0
      %1924 = vmatpush.bf16.msra.mxu0 0
      %1925 = vmatpush.bf16.msra.mxu0 0
      %1926 = vmatpush.bf16.msra.mxu0 0
      %1927 = vmatpush.bf16.msra.mxu0 0
      %1928 = vmatpush.bf16.msra.mxu0 0
      %1929 = vmatpush.bf16.msra.mxu0 0
      %1930 = vmatpush.bf16.msra.mxu0 %v1786
      %1931 = vmatpush.bf16.msra.mxu0 %v1784
      %1932 = vmatmul.bf16.gmra.mxu0 %v1824
      %v1933 = vpop.f32.mrf.mxu0
      %v1934 = vadd.f32 %v1915, %v1933
      %v1935 = vpop.f32.mrf.mxu0
      %v1936 = vadd.f32 %v1917, %v1935
      %1937 = vmatmul.bf16.gmra.mxu0 %v1827
      %v1938 = vpop.f32.mrf.mxu0
      %v1939 = vadd.f32 %v1920, %v1938
      %v1940 = vpop.f32.mrf.mxu0
      %v1941 = vadd.f32 %v1922, %v1940
      %1942 = vdwg.mxu0
      %v1943 = vadd.f32 %v1877, %v1934
      %1944 = vadd.xlane.f32.xlu0 %v1943
      %v1945 = vpop.xlane.xlu0 %1944
      %v1946 = vadd.f32 %v1879, %v1936
      %1947 = vadd.xlane.f32.xlu0 %v1946
      %v1948 = vpop.xlane.xlu0 %1947
      %v1949 = vadd.f32 %v1882, %v1939
      %1950 = vadd.xlane.f32.xlu0 %v1949
      %v1951 = vpop.xlane.xlu0 %1950
      %v1952 = vadd.f32 %v1884, %v1941
      %1953 = vadd.xlane.f32.xlu0 %v1952
      %v1954 = vpop.xlane.xlu0 %1953
      %v1955 = vmul.f32 %v1945, 0.00390625
      %v1956 = vmul.f32 %v1948, 0.00390625
      %v1957 = vmul.f32 %v1951, 0.00390625
      %v1958 = vmul.f32 %v1954, 0.00390625
      %v1959 = vld [vmem:[%s6] sm:$0x3]
      %v1960 = vld [vmem:[%s7] sm:$0x3]
      %v1962 = vsel %vm1040, %v1959, 0
      %1964 = vmatpush.msra.mxu0 0.0
      %1965 = vmatpush.msra.mxu0 0.0
      %1966 = vmatpush.msra.mxu0 0.0
      %1967 = vmatpush.msra.mxu0 0.0
      %1968 = vmatpush.msra.mxu0 0.0
      %1969 = vmatpush.msra.mxu0 0.0
      %1970 = vmatpush.msra.mxu0 0.0
      %1971 = vmatpush.msra.mxu0 0.0
      %1972 = vmatpush.msra.mxu0 0.0
      %1973 = vmatpush.msra.mxu0 0.0
      %1974 = vmatpush.msra.mxu0 0.0
      %1975 = vmatpush.msra.mxu0 0.0
      %1976 = vmatpush.msra.mxu0 %v1958
      %1977 = vmatpush.msra.mxu0 %v1957
      %1978 = vmatpush.msra.mxu0 %v1956
      %1979 = vmatpush.msra.mxu0 %v1955
      %1980 = vmatmul.f32.gmra.mxu0 %v1962
      %v1981 = vpop.f32.mrf.mxu0
      %v1982 = vadd.f32 %v1960, %v1981
      %1983 = vdwg.mxu0
      %v1984 = vmax.f32 %v1982, 0.0
      %v1985 = vld [vmem:[%s8] sm:$0xff]
      %v1986 = vld [vmem:[%s8 + $0x8] sm:$0xff]
      %v1987 = vld [vmem:[%s8 + $0x10] sm:$0xff]
      %v1988 = vld [vmem:[%s8 + $0x18] sm:$0xff]
      %v1989 = vld [vmem:[%s9] sm:$0xff]
      %v1990 = vld [vmem:[%s9 + $0x8] sm:$0xff]
      %v1991 = vld [vmem:[%s9 + $0x10] sm:$0xff]
      %v1992 = vld [vmem:[%s9 + $0x18] sm:$0xff]
      %vm1993 = vcmask 15360
      %v1995 = vsel %vm1993, %v1985, 0
      %v1998 = vsel %vm1993, %v1986, 0
      %v2001 = vsel %vm1993, %v1987, 0
      %v2004 = vsel %vm1993, %v1988, 0
      %vm2006 = vcmask 1041408
      %v2008 = vsel %vm2006, %v1984, 0
      %2010 = vmatpush.msra.mxu0 0.0
      %2011 = vmatpush.msra.mxu0 0.0
      %2012 = vmatpush.msra.mxu0 0.0
      %2013 = vmatpush.msra.mxu0 0.0
      %2014 = vmatpush.msra.mxu0 0.0
      %2015 = vmatpush.msra.mxu0 0.0
      %2016 = vmatpush.msra.mxu0 0.0
      %2017 = vmatpush.msra.mxu0 0.0
      %2018 = vmatpush.msra.mxu0 0.0
      %2019 = vmatpush.msra.mxu0 0.0
      %2020 = vmatpush.msra.mxu0 0.0
      %2021 = vmatpush.msra.mxu0 0.0
      %2022 = vmatpush.msra.mxu0 0.0
      %2023 = vmatpush.msra.mxu0 0.0
      %2024 = vmatpush.msra.mxu0 0.0
      %2025 = vmatpush.msra.mxu0 %v2008
      %2026 = vmatmul.f32.gmra.mxu0 %v1995
      %v2027 = vpop.f32.mrf.mxu0
      %v2028 = vadd.f32 %v1989, %v2027
      %2029 = vmatmul.f32.gmra.mxu0 %v1998
      %v2030 = vpop.f32.mrf.mxu0
      %v2031 = vadd.f32 %v1990, %v2030
      %2032 = vmatmul.f32.gmra.mxu0 %v2001
      %v2033 = vpop.f32.mrf.mxu0
      %v2034 = vadd.f32 %v1991, %v2033
      %2035 = vmatmul.f32.gmra.mxu0 %v2004
      %v2036 = vpop.f32.mrf.mxu0
      %v2037 = vadd.f32 %v1992, %v2036
      %2038 = vdwg.mxu0
      %v2039 = vsub.f32 0.0, %v2028
      %v2040 = vsub.f32 0.0, %v2031
      %v2041 = vsub.f32 0.0, %v2034
      %v2042 = vsub.f32 0.0, %v2037
      %v2043 = vmul.f32 %v2039, 1.442695
      %v2044 = vpow.pop %v2043
      %v2045 = vmul.f32 %v2040, 1.442695
      %v2046 = vpow.pop %v2045
      %v2047 = vmul.f32 %v2041, 1.442695
      %v2048 = vpow.pop %v2047
      %v2049 = vmul.f32 %v2042, 1.442695
      %v2050 = vpow.pop %v2049
      %v2051 = vadd.f32 %v2044, 1.0
      %v2052 = vadd.f32 %v2046, 1.0
      %v2053 = vadd.f32 %v2048, 1.0
      %v2054 = vadd.f32 %v2050, 1.0
      %v2055 = vrcp.pop %v2051
      %v2056 = vmul.f32 %v2051, %v2055
      %v2057 = vsub.f32 1.0, %v2056
      %v2058 = vmul.f32 %v2055, %v2057
      %v2059 = vadd.f32 %v2055, %v2058
      %vm2060 = vweird.f32 %v2051
      %vm2061 = vweird.f32 %v2055
      %vm2062 = vmor %vm2060, %vm2061
      %v2063 = vsel %vm2062, %v2055, %v2059
      %v2064 = vand.u32 2147483647, %v2051
      %vm2065 = vcmp.eq.f32.partialorder %v2064, 8.507059e+37
      %v2066 = vand.u32 %v2051, 2147483648
      %v2067 = vor.u32 1.1754944e-38, %v2066
      %v2068 = vsel %vm2065, %v2067, %v2063
      %v2069 = vmul.f32 1.0, %v2068
      %v2070 = vrcp.pop %v2052
      %v2071 = vmul.f32 %v2052, %v2070
      %v2072 = vsub.f32 1.0, %v2071
      %v2073 = vmul.f32 %v2070, %v2072
      %v2074 = vadd.f32 %v2070, %v2073
      %vm2075 = vweird.f32 %v2052
      %vm2076 = vweird.f32 %v2070
      %vm2077 = vmor %vm2075, %vm2076
      %v2078 = vsel %vm2077, %v2070, %v2074
      %v2079 = vand.u32 2147483647, %v2052
      %vm2080 = vcmp.eq.f32.partialorder %v2079, 8.507059e+37
      %v2081 = vand.u32 %v2052, 2147483648
      %v2082 = vor.u32 1.1754944e-38, %v2081
      %v2083 = vsel %vm2080, %v2082, %v2078
      %v2084 = vmul.f32 1.0, %v2083
      %v2085 = vrcp.pop %v2053
      %v2086 = vmul.f32 %v2053, %v2085
      %v2087 = vsub.f32 1.0, %v2086
      %v2088 = vmul.f32 %v2085, %v2087
      %v2089 = vadd.f32 %v2085, %v2088
      %vm2090 = vweird.f32 %v2053
      %vm2091 = vweird.f32 %v2085
      %vm2092 = vmor %vm2090, %vm2091
      %v2093 = vsel %vm2092, %v2085, %v2089
      %v2094 = vand.u32 2147483647, %v2053
      %vm2095 = vcmp.eq.f32.partialorder %v2094, 8.507059e+37
      %v2096 = vand.u32 %v2053, 2147483648
      %v2097 = vor.u32 1.1754944e-38, %v2096
      %v2098 = vsel %vm2095, %v2097, %v2093
      %v2099 = vmul.f32 1.0, %v2098
      %v2100 = vrcp.pop %v2054
      %v2101 = vmul.f32 %v2054, %v2100
      %v2102 = vsub.f32 1.0, %v2101
      %v2103 = vmul.f32 %v2100, %v2102
      %v2104 = vadd.f32 %v2100, %v2103
      %vm2105 = vweird.f32 %v2054
      %vm2106 = vweird.f32 %v2100
      %vm2107 = vmor %vm2105, %vm2106
      %v2108 = vsel %vm2107, %v2100, %v2104
      %v2109 = vand.u32 2147483647, %v2054
      %vm2110 = vcmp.eq.f32.partialorder %v2109, 8.507059e+37
      %v2111 = vand.u32 %v2054, 2147483648
      %v2112 = vor.u32 1.1754944e-38, %v2111
      %v2113 = vsel %vm2110, %v2112, %v2108
      %v2114 = vmul.f32 1.0, %v2113
      %v2115 = vld [vmem:[%s354] sm:$0xff]
      %v2116 = vld [vmem:[%s354 + $0x8] sm:$0xff]
      %v2117 = vld [vmem:[%s354 + $0x10] sm:$0xff]
      %v2118 = vld [vmem:[%s354 + $0x18] sm:$0xff]
      %v2119 = vld [vmem:[%s354 + $0x20] sm:$0xff]
      %v2120 = vld [vmem:[%s354 + $0x28] sm:$0xff]
      %v2121 = vld [vmem:[%s354 + $0x30] sm:$0xff]
      %v2122 = vld [vmem:[%s354 + $0x38] sm:$0xff]
      %2124 = vset.pattern.permute.xlu0 0
      %2125 = vperm.xlu0 %2124, %v2069
      %v2126 = vpop.permute.xlu0 %2125
      %2129 = vset.pattern.permute.xlu0 0
      %2130 = vperm.xlu0 %2129, %v2084
      %v2131 = vpop.permute.xlu0 %2130
      %2134 = vset.pattern.permute.xlu0 0
      %2135 = vperm.xlu0 %2134, %v2099
      %v2136 = vpop.permute.xlu0 %2135
      %2139 = vset.pattern.permute.xlu0 0
      %2140 = vperm.xlu0 %2139, %v2114
      %v2141 = vpop.permute.xlu0 %2140
      %v2143 = vmul.f32 %v1877, %v2126
      %v2144 = vmul.f32 %v1934, %v2126
      %v2145 = vmul.f32 %v1879, %v2131
      %v2146 = vmul.f32 %v1936, %v2131
      %v2147 = vmul.f32 %v1882, %v2136
      %v2148 = vmul.f32 %v1939, %v2136
      %v2149 = vmul.f32 %v1884, %v2141
      %v2150 = vmul.f32 %v1941, %v2141
      %v2151 = vadd.f32 %v2115, %v2143
      %v2152 = vadd.f32 %v2116, %v2144
      %v2153 = vadd.f32 %v2117, %v2145
      %v2154 = vadd.f32 %v2118, %v2146
      %v2155 = vadd.f32 %v2119, %v2147
      %v2156 = vadd.f32 %v2120, %v2148
      %v2157 = vadd.f32 %v2121, %v2149
      %v2158 = vadd.f32 %v2122, %v2150
      %2159 = vst [vmem:[%s359] sm:$0xff] %v2151
      %2160 = vst [vmem:[%s359 + $0x8] sm:$0xff] %v2152
      %2161 = vst [vmem:[%s359 + $0x10] sm:$0xff] %v2153
      %2162 = vst [vmem:[%s359 + $0x18] sm:$0xff] %v2154
      %2163 = vst [vmem:[%s359 + $0x20] sm:$0xff] %v2155
      %2164 = vst [vmem:[%s359 + $0x28] sm:$0xff] %v2156
      %2165 = vst [vmem:[%s359 + $0x30] sm:$0xff] %v2157
      %2166 = vst [vmem:[%s359 + $0x38] sm:$0xff] %v2158
      %p2167 = scmp.lt.s32.totalorder %s21, 1
      %s2168 = scalar_select %p2167, %s21, 1
      %s2169 = smul.addr %s2168, 8
      %s2170 = smul.addr %s2169, 8
      %s2171 = scalar_lea.vmem %s10, %s2170
      // Predicated region
      $region61: #{rcab_forward.1} parent=59 // pred_check
        %p2172 = pneg %p254
      $region62: #{rcab_forward.1} parent=59 // pred_check_branch
        %2174 = sbr.rel (%p2172) target = $region64
      $region63: #{rcab_forward.1} parent=59 // pred_region
        _
      $region64: #{rcab_forward.1} parent=59 // pred_fallthru
        _
    $region60: #{rcab_forward.1} parent=5 // pred_fallthru
      _
    %p2175 = scmp.le.s32.totalorder 2, %s16
    // Predicated region
    $region65: #{rcab_forward.1} parent=5 // pred_check
      %p2176 = pneg %p2175
    $region66: #{rcab_forward.1} parent=5 // pred_check_branch
      %2178 = sbr.rel (%p2176) target = $region68
    $region67: #{rcab_forward.1} parent=5 // pred_region
      %s2179 = ssub.s32 %s16, 2
      // Predicated region
      $region69: #{rcab_forward.1} parent=67 // pred_check
        %p2180 = pneg %p260
      $region70: #{rcab_forward.1} parent=67 // pred_check_branch
        %2182 = sbr.rel (%p2180) target = $region72
      $region71: #{rcab_forward.1} parent=67 // pred_region
        %p2183 = scmp.lt.s32.totalorder %s22, 1
        %s2184 = scalar_select %p2183, %s22, 1
        %s2185 = smul.addr %s2184, 8
        %s2186 = smul.addr %s2185, 8
        %s2187 = scalar_lea.vmem %s10, %s2186
      $region72: #{rcab_forward.1} parent=67 // pred_fallthru
        _
    $region68: #{rcab_forward.1} parent=5 // pred_fallthru
      _
  $region6: #{rcab_forward.1} parent=0 // loop_footer
    %s20 = sadd.s32 1, %s16
  $region7: #{rcab_forward.1} parent=0 // loop_footer_branch
    %15 = sbr.rel target = $region3
  $region8: #{rcab_forward.1} parent=0 // loop_exit
    _

</llo_original>
